<compile_context>
chip_gen: v6e
topology: v6e:2x2x1
jax: 0.10.0
libtpu: 0.0.40
codegen_flags: <defaults>
</compile_context>

<pallas_src>
import functools

import jax
import jax.numpy as jnp
import numpy as np
from jax.experimental import pallas as pl
from jax.experimental.pallas import tpu as pltpu

EPS = 1e-5
VMEM_LIMIT = 32 * 1024 * 1024

# MXU input dtype.  Set to jnp.bfloat16 on v6e/v7x for the fast MXU path (accumulation,
# BN statistics, affine and ReLU stay in float32 regardless).  Kept at float32 here so
# the self-test below meets a tight 2e-3 tolerance against the f32 reference.
MXU_DTYPE = jnp.float32


# ----------------------------- Pallas kernels ------------------------------ #

def deconv2x2_kernel(x_ref, w_ref, b_ref, o_ref):
    # x: (Cin, T)   w: (4*Cout, Cin)   b: (4*Cout, 1)   o: (4*Cout, T)   lanes = pixels
    o_ref[...] = (
        jnp.dot(w_ref[...].astype(MXU_DTYPE), x_ref[...].astype(MXU_DTYPE),
                preferred_element_type=jnp.float32)
        + b_ref[...]
    )


def _conv_stats_epilogue(acc, b_ref, y_ref, ssum_ref, ssq_ref):
    acc = acc + b_ref[...]                   # bias (Cout, 1) broadcast over lanes
    y_ref[...] = acc                         # pre-BN activation, lane-dense store
    # per-tile partial BN statistics (reduced over the lane/pixel axis by the XLU)
    ssum_ref[...] = jnp.sum(acc, axis=1, keepdims=True)[None]
    ssq_ref[...] = jnp.sum(acc * acc, axis=1, keepdims=True)[None]


def conv3x3_stats_kernel(p_ref, w_ref, b_ref, y_ref, ssum_ref, ssq_ref):
    # p: (9*Cin, T)   w: (Cout, 9*Cin)   -> single dot, K = 9*Cin
    acc = jnp.dot(w_ref[...].astype(MXU_DTYPE), p_ref[...].astype(MXU_DTYPE),
                  preferred_element_type=jnp.float32)
    _conv_stats_epilogue(acc, b_ref, y_ref, ssum_ref, ssq_ref)


def conv3x3_two_in_stats_kernel(pa_ref, pb_ref, wa_ref, wb_ref, b_ref,
                                y_ref, ssum_ref, ssq_ref):
    # channel-concat fused: two patch slabs, two weight slabs, one accumulator
    acc = jnp.dot(wa_ref[...].astype(MXU_DTYPE), pa_ref[...].astype(MXU_DTYPE),
                  preferred_element_type=jnp.float32)
    acc = acc + jnp.dot(wb_ref[...].astype(MXU_DTYPE), pb_ref[...].astype(MXU_DTYPE),
                        preferred_element_type=jnp.float32)
    _conv_stats_epilogue(acc, b_ref, y_ref, ssum_ref, ssq_ref)


def bn_relu_kernel(y_ref, scale_ref, shift_ref, o_ref):
    # y: (Cout, T)   scale/shift: (Cout, 1)   -> o = relu(y*scale + shift), f32 math
    o_ref[...] = jnp.maximum(y_ref[...] * scale_ref[...] + shift_ref[...], 0.0)


# ------------------------------- helpers ----------------------------------- #

def _pick_tile(m):
    """Largest lane-tile that divides m (multiple of 128); fall back to one full block."""
    for t in (512, 256, 128):
        if m % t == 0:
            return t
    return m


_cparams = functools.partial(pltpu.CompilerParams, vmem_limit_bytes=VMEM_LIMIT)


# ------------------------------- wrappers ---------------------------------- #

def conv_transpose_2x2_s2(x_nchw, w_torch, b):
    """ConvTranspose2d(k=2, s=2, p=0).  w_torch: (Cin, Cout, 2, 2) (PyTorch layout)."""
    N, Cin, H, W = x_nchw.shape
    Cout = w_torch.shape[1]
    M = N * H * W
    x2d = jnp.transpose(x_nchw, (1, 0, 2, 3)).reshape(Cin, M)        # lanes = pixels
    # (Cin,Cout,2,2) -> (2,2,Cout,Cin) -> (4*Cout, Cin); row = (kh*2+kw)*Cout + co
    w2 = jnp.transpose(w_torch, (2, 3, 1, 0)).reshape(4 * Cout, Cin)
    b2 = jnp.tile(b.reshape(1, Cout), (4, 1)).reshape(4 * Cout, 1)

    tile = _pick_tile(M)
    nt = M // tile
    y = pl.pallas_call(
        deconv2x2_kernel,
        out_shape=jax.ShapeDtypeStruct((4 * Cout, M), jnp.float32),
        grid=(nt,),
        in_specs=[pl.BlockSpec((Cin, tile), lambda i: (0, i)),
                  pl.BlockSpec((4 * Cout, Cin), lambda i: (0, 0)),
                  pl.BlockSpec((4 * Cout, 1), lambda i: (0, 0))],
        out_specs=pl.BlockSpec((4 * Cout, tile), lambda i: (0, i)),
        compiler_params=_cparams(dimension_semantics=("parallel",)),
    )(x2d, w2, b2)

    # TODO(synk): the tap->spatial interleave below is an XLA layout shuffle; it could be
    # folded into the next kernel's patch indexing, kept as glue here for clarity.
    y = y.reshape(2, 2, Cout, N, H, W)
    y = jnp.transpose(y, (3, 2, 4, 0, 5, 1)).reshape(N, Cout, 2 * H, 2 * W)
    return y


def _im2col_cf(x_nchw):
    """(N,C,H,W) -> (9*C, N*H*W): rows = (tap, channel), lanes = pixels (3x3, pad=1)."""
    N, C, H, W = x_nchw.shape
    xp = jnp.pad(x_nchw, ((0, 0), (0, 0), (1, 1), (1, 1)))
    taps = []
    for kh in range(3):
        for kw in range(3):
            t = xp[:, :, kh:kh + H, kw:kw + W]                         # (N, C, H, W)
            taps.append(jnp.transpose(t, (1, 0, 2, 3)).reshape(C, N * H * W))
    return jnp.concatenate(taps, axis=0)                               # (9*C, M)


def conv3x3_bn_relu(x_parts, w_hwio, b, gamma, beta):
    """Conv2d(3x3, pad=1) + BatchNorm2d (training-mode batch stats) + ReLU.

    x_parts: list of NCHW tensors whose channel-concat (torch.cat order) is the conv
    input -- the concat itself is fused into the kernel.  w_hwio: (3,3,sum(Ci),Cout).
    """
    N, _, H, W = x_parts[0].shape
    M = N * H * W
    Cout = w_hwio.shape[-1]

    sizes = [int(p.shape[1]) for p in x_parts]
    offs = np.cumsum([0] + sizes)
    patches = [_im2col_cf(p) for p in x_parts]                         # (9*Ci, M) each
    # weight slab per part: (3,3,Ci,Cout) -> (9*Ci, Cout) -> (Cout, 9*Ci)
    ws = [jnp.transpose(w_hwio[:, :, offs[i]:offs[i + 1], :]
                        .reshape(9 * sizes[i], Cout))
          for i in range(len(x_parts))]
    b2 = b.reshape(Cout, 1)

    tile = _pick_tile(M)
    nt = M // tile

    kernel = (conv3x3_two_in_stats_kernel if len(x_parts) == 2
              else conv3x3_stats_kernel)
    in_specs = []
    for p in patches:
        in_specs.append(pl.BlockSpec((p.shape[0], tile), lambda i: (0, i)))
    for w in ws:
        in_specs.append(pl.BlockSpec(w.shape, lambda i: (0, 0)))
    in_specs.append(pl.BlockSpec((Cout, 1), lambda i: (0, 0)))

    y, ssum, ssq = pl.pallas_call(
        kernel,
        out_shape=(jax.ShapeDtypeStruct((Cout, M), jnp.float32),
                   jax.ShapeDtypeStruct((nt, Cout, 1), jnp.float32),
                   jax.ShapeDtypeStruct((nt, Cout, 1), jnp.float32)),
        grid=(nt,),
        in_specs=in_specs,
        out_specs=(pl.BlockSpec((Cout, tile), lambda i: (0, i)),
                   pl.BlockSpec((1, Cout, 1), lambda i: (i, 0, 0)),
                   pl.BlockSpec((1, Cout, 1), lambda i: (i, 0, 0))),
        compiler_params=_cparams(dimension_semantics=("parallel",)),
    )(*patches, *ws, b2)

    # Tiny cross-tile reduction of partial BN statistics (nt x Cout scalars) + BN params.
    tot_s = jnp.sum(ssum, axis=(0, 2))                                 # (Cout,)
    tot_q = jnp.sum(ssq, axis=(0, 2))                                  # (Cout,)
    mean = tot_s / M
    var = tot_q / M - mean * mean                                      # biased (train-mode)
    scale = gamma * jax.lax.rsqrt(var + EPS)
    shift = beta - mean * scale

    h = pl.pallas_call(
        bn_relu_kernel,
        out_shape=jax.ShapeDtypeStruct((Cout, M), jnp.float32),
        grid=(nt,),
        in_specs=[pl.BlockSpec((Cout, tile), lambda i: (0, i)),
                  pl.BlockSpec((Cout, 1), lambda i: (0, 0)),
                  pl.BlockSpec((Cout, 1), lambda i: (0, 0))],
        out_specs=pl.BlockSpec((Cout, tile), lambda i: (0, i)),
        compiler_params=_cparams(dimension_semantics=("parallel",)),
    )(y, scale.reshape(Cout, 1), shift.reshape(Cout, 1))

    return jnp.transpose(h.reshape(Cout, N, H, W), (1, 0, 2, 3))       # back to NCHW


def decoder_forward(params, inputs_nchw, skip_nchw):
    up = conv_transpose_2x2_s2(inputs_nchw, params["up_w"], params["up_b"])
    # torch.cat([up, skip], axis=1) is fused into the first conv kernel (two patch slabs)
    h = conv3x3_bn_relu([up, skip_nchw], params["c1_w"], params["c1_b"],
                        params["bn1_g"], params["bn1_b"])
    h = conv3x3_bn_relu([h], params["c2_w"], params["c2_b"],
                        params["bn2_g"], params["bn2_b"])
    return h


# --------------------------- pure-JAX reference ----------------------------- #

def reference_forward(params, inputs_nchw, skip_nchw):
    x = jnp.transpose(inputs_nchw, (0, 2, 3, 1))
    s = jnp.transpose(skip_nchw, (0, 2, 3, 1))
    # transposed conv via lhs dilation + spatially flipped kernel
    wt = params["up_w"]                                      # (Cin, Cout, 2, 2)
    w_hwio = jnp.transpose(wt, (2, 3, 0, 1))[::-1, ::-1, :, :]
    up = jax.lax.conv_general_dilated(
        x, w_hwio, window_strides=(1, 1), padding=[(1, 1), (1, 1)],
        lhs_dilation=(2, 2), dimension_numbers=("NHWC", "HWIO", "NHWC"),
    ) + params["up_b"]
    cat = jnp.concatenate([up, s], axis=-1)

    def cbr(z, w_hwio, b, g, beta):
        y = jax.lax.conv_general_dilated(
            z, w_hwio, (1, 1), padding=[(1, 1), (1, 1)],
            dimension_numbers=("NHWC", "HWIO", "NHWC"),
        ) + b
        mean = jnp.mean(y, axis=(0, 1, 2), keepdims=True)
        var = jnp.mean((y - mean) ** 2, axis=(0, 1, 2), keepdims=True)
        y = (y - mean) * jax.lax.rsqrt(var + EPS) * g + beta
        return jnp.maximum(y, 0.0)

    h = cbr(cat, params["c1_w"], params["c1_b"], params["bn1_g"], params["bn1_b"])
    h = cbr(h, params["c2_w"], params["c2_b"], params["bn2_g"], params["bn2_b"])
    return jnp.transpose(h, (0, 3, 1, 2))


# ---------------------------------- main ------------------------------------ #

if __name__ == "__main__":
    IN_C, OUT_C = 8, 4
    N, H, W = 2, 16, 16          # decoder input spatial; skip is 2x larger

    key = jax.random.PRNGKey(0)
    keys = jax.random.split(key, 12)

    # Deterministic synthetic parameters (shapes follow the PyTorch module).
    params = {
        # ConvTranspose2d(in_c, out_c, 2, 2): weight (in_c, out_c, 2, 2)
        "up_w": 0.1 * jax.random.normal(keys[0], (IN_C, OUT_C, 2, 2), jnp.float32),
        "up_b": 0.1 * jax.random.normal(keys[1], (OUT_C,), jnp.float32),
        # conv1: Conv2d(2*out_c, out_c, 3, pad=1) stored HWIO (3,3,Cin,Cout)
        "c1_w": 0.1 * jax.random.normal(keys[2], (3, 3, 2 * OUT_C, OUT_C), jnp.float32),
        "c1_b": 0.1 * jax.random.normal(keys[3], (OUT_C,), jnp.float32),
        "bn1_g": 1.0 + 0.1 * jax.random.normal(keys[4], (OUT_C,), jnp.float32),
        "bn1_b": 0.1 * jax.random.normal(keys[5], (OUT_C,), jnp.float32),
        # conv2: Conv2d(out_c, out_c, 3, pad=1)
        "c2_w": 0.1 * jax.random.normal(keys[6], (3, 3, OUT_C, OUT_C), jnp.float32),
        "c2_b": 0.1 * jax.random.normal(keys[7], (OUT_C,), jnp.float32),
        "bn2_g": 1.0 + 0.1 * jax.random.normal(keys[8], (OUT_C,), jnp.float32),
        "bn2_b": 0.1 * jax.random.normal(keys[9], (OUT_C,), jnp.float32),
    }

    inputs = jax.random.normal(keys[10], (N, IN_C, H, W), jnp.float32)         # NCHW
    skip = jax.random.normal(keys[11], (N, OUT_C, 2 * H, 2 * W), jnp.float32)  # NCHW

    out = jax.jit(decoder_forward)(params, inputs, skip)
    out = jax.block_until_ready(out)
    assert out.shape == (N, OUT_C, 2 * H, 2 * W), out.shape

    ref = jax.block_until_ready(reference_forward(params, inputs, skip))
    np.testing.assert_allclose(np.asarray(out), np.asarray(ref), rtol=2e-3, atol=2e-3)

    print("KERNEL_OK")
</pallas_src>

<mosaic_0001>
module attributes {stable_mosaic.version = 11 : i64} {
  func.func @deconv2x2_kernel(%arg0: i32, %arg1: memref<8x512xf32, #tpu.memory_space<vmem>>, %arg2: memref<16x8xf32, #tpu.memory_space<vmem>>, %arg3: memref<16x1xf32, #tpu.memory_space<vmem>>, %arg4: memref<16x512xf32, #tpu.memory_space<vmem>>) attributes {dimension_semantics = [#tpu.dimension_semantics<parallel>], iteration_bounds = array<i64: 1>, scalar_prefetch = 0 : i64, scratch_operands = 0 : i64, tpu.core_type = #tpu.core_type<tc>, window_params = [{transform_indices = @transform_0, window_bounds = array<i64: 8, 512>}, {pipeline_mode = #tpu.pipeline_mode<synchronous>, transform_indices = @transform_1, window_bounds = array<i64: 16, 8>}, {pipeline_mode = #tpu.pipeline_mode<synchronous>, transform_indices = @transform_2, window_bounds = array<i64: 16, 1>}, {transform_indices = @transform_3, window_bounds = array<i64: 16, 512>}]} {
    %c0 = arith.constant 0 : index
    %c0_0 = arith.constant 0 : index
    %0 = vector.load %arg2[%c0, %c0_0] : memref<16x8xf32, #tpu.memory_space<vmem>>, vector<16x8xf32>
    %c0_1 = arith.constant 0 : index
    %c0_2 = arith.constant 0 : index
    %1 = vector.load %arg1[%c0_1, %c0_2] : memref<8x512xf32, #tpu.memory_space<vmem>>, vector<8x512xf32>
    %cst = arith.constant dense<0.000000e+00> : vector<16x512xf32>
    %2 = tpu.matmul %0, %1, %cst {dimension_numbers = #tpu.dot_dimension_numbers<[1], [0], [0], [1], [0, 0, 1, 1], [], []>} : vector<16x8xf32>, vector<8x512xf32>, vector<16x512xf32> -> vector<16x512xf32>
    %c0_3 = arith.constant 0 : index
    %c0_4 = arith.constant 0 : index
    %3 = vector.load %arg3[%c0_3, %c0_4] : memref<16x1xf32, #tpu.memory_space<vmem>>, vector<16x1xf32>
    %4 = vector.broadcast %3 : vector<16x1xf32> to vector<16x512xf32>
    %5 = arith.addf %2, %4 : vector<16x512xf32>
    %c0_5 = arith.constant 0 : index
    %c0_6 = arith.constant 0 : index
    %6 = vector.load %arg4[%c0_5, %c0_6] : memref<16x512xf32, #tpu.memory_space<vmem>>, vector<16x512xf32>
    tpu.vector_store %arg4[%c0_5, %c0_6], %5 {strides = array<i32>} : memref<16x512xf32, #tpu.memory_space<vmem>>, vector<16x512xf32>,
    return
  }
  func.func @transform_0(%arg0: i32) -> (i32, i32) {
    %c0_i32 = arith.constant 0 : i32
    %c0_i32_0 = arith.constant 0 : i32
    return %c0_i32, %arg0 : i32, i32
  }
  func.func @transform_1(%arg0: i32) -> (i32, i32) {
    %c0_i32 = arith.constant 0 : i32
    %c0_i32_0 = arith.constant 0 : i32
    %c0_i32_1 = arith.constant 0 : i32
    return %c0_i32, %c0_i32_0 : i32, i32
  }
  func.func @transform_2(%arg0: i32) -> (i32, i32) {
    %c0_i32 = arith.constant 0 : i32
    %c0_i32_0 = arith.constant 0 : i32
    %c0_i32_1 = arith.constant 0 : i32
    return %c0_i32, %c0_i32_0 : i32, i32
  }
  func.func @transform_3(%arg0: i32) -> (i32, i32) {
    %c0_i32 = arith.constant 0 : i32
    %c0_i32_0 = arith.constant 0 : i32
    return %c0_i32, %arg0 : i32, i32
  }
}

module attributes {stable_mosaic.version = 11 : i64} {
  func.func @conv3x3_two_in_stats_kernel(%arg0: i32, %arg1: memref<36x512xf32, #tpu.memory_space<vmem>>, %arg2: memref<36x512xf32, #tpu.memory_space<vmem>>, %arg3: memref<4x36xf32, #tpu.memory_space<vmem>>, %arg4: memref<4x36xf32, #tpu.memory_space<vmem>>, %arg5: memref<4x1xf32, #tpu.memory_space<vmem>>, %arg6: memref<4x512xf32, #tpu.memory_space<vmem>>, %arg7: memref<1x4x1xf32, #tpu.memory_space<vmem>>, %arg8: memref<1x4x1xf32, #tpu.memory_space<vmem>>) attributes {dimension_semantics = [#tpu.dimension_semantics<parallel>], iteration_bounds = array<i64: 4>, scalar_prefetch = 0 : i64, scratch_operands = 0 : i64, tpu.core_type = #tpu.core_type<tc>, window_params = [{transform_indices = @transform_0, window_bounds = array<i64: 36, 512>}, {transform_indices = @transform_1, window_bounds = array<i64: 36, 512>}, {pipeline_mode = #tpu.pipeline_mode<synchronous>, transform_indices = @transform_2, window_bounds = array<i64: 4, 36>}, {pipeline_mode = #tpu.pipeline_mode<synchronous>, transform_indices = @transform_3, window_bounds = array<i64: 4, 36>}, {pipeline_mode = #tpu.pipeline_mode<synchronous>, transform_indices = @transform_4, window_bounds = array<i64: 4, 1>}, {transform_indices = @transform_5, window_bounds = array<i64: 4, 512>}, {transform_indices = @transform_6, window_bounds = array<i64: 1, 4, 1>}, {transform_indices = @transform_7, window_bounds = array<i64: 1, 4, 1>}]} {
    %c0 = arith.constant 0 : index
    %c0_0 = arith.constant 0 : index
    %0 = vector.load %arg3[%c0, %c0_0] : memref<4x36xf32, #tpu.memory_space<vmem>>, vector<4x36xf32>
    %c0_1 = arith.constant 0 : index
    %c0_2 = arith.constant 0 : index
    %1 = vector.load %arg1[%c0_1, %c0_2] : memref<36x512xf32, #tpu.memory_space<vmem>>, vector<36x512xf32>
    %cst = arith.constant dense<0.000000e+00> : vector<4x512xf32>
    %2 = tpu.matmul %0, %1, %cst {dimension_numbers = #tpu.dot_dimension_numbers<[1], [0], [0], [1], [0, 0, 1, 1], [], []>} : vector<4x36xf32>, vector<36x512xf32>, vector<4x512xf32> -> vector<4x512xf32>
    %c0_3 = arith.constant 0 : index
    %c0_4 = arith.constant 0 : index
    %3 = vector.load %arg4[%c0_3, %c0_4] : memref<4x36xf32, #tpu.memory_space<vmem>>, vector<4x36xf32>
    %c0_5 = arith.constant 0 : index
    %c0_6 = arith.constant 0 : index
    %4 = vector.load %arg2[%c0_5, %c0_6] : memref<36x512xf32, #tpu.memory_space<vmem>>, vector<36x512xf32>
    %cst_7 = arith.constant dense<0.000000e+00> : vector<4x512xf32>
    %5 = tpu.matmul %3, %4, %cst_7 {dimension_numbers = #tpu.dot_dimension_numbers<[1], [0], [0], [1], [0, 0, 1, 1], [], []>} : vector<4x36xf32>, vector<36x512xf32>, vector<4x512xf32> -> vector<4x512xf32>
    %6 = arith.addf %2, %5 : vector<4x512xf32>
    %c0_8 = arith.constant 0 : index
    %c0_9 = arith.constant 0 : index
    %7 = vector.load %arg5[%c0_8, %c0_9] : memref<4x1xf32, #tpu.memory_space<vmem>>, vector<4x1xf32>
    %8 = vector.broadcast %7 : vector<4x1xf32> to vector<4x512xf32>
    %9 = arith.addf %6, %8 : vector<4x512xf32>
    %c0_10 = arith.constant 0 : index
    %c0_11 = arith.constant 0 : index
    %10 = vector.load %arg6[%c0_10, %c0_11] : memref<4x512xf32, #tpu.memory_space<vmem>>, vector<4x512xf32>
    tpu.vector_store %arg6[%c0_10, %c0_11], %9 {strides = array<i32>} : memref<4x512xf32, #tpu.memory_space<vmem>>, vector<4x512xf32>,
    %cst_12 = arith.constant dense<0.000000e+00> : vector<4xf32>
    %11 = vector.multi_reduction <add>, %9, %cst_12 [1] : vector<4x512xf32> to vector<4xf32>
    %12 = vector.shape_cast %11 : vector<4xf32> to vector<4x1xf32>
    %13 = vector.shape_cast %12 : vector<4x1xf32> to vector<1x4x1xf32>
    %c0_13 = arith.constant 0 : index
    %c0_14 = arith.constant 0 : index
    %c0_15 = arith.constant 0 : index
    %14 = vector.load %arg7[%c0_13, %c0_14, %c0_15] : memref<1x4x1xf32, #tpu.memory_space<vmem>>, vector<1x4x1xf32>
    tpu.vector_store %arg7[%c0_13, %c0_14, %c0_15], %13 {strides = array<i32>} : memref<1x4x1xf32, #tpu.memory_space<vmem>>, vector<1x4x1xf32>,
    %15 = arith.mulf %9, %9 : vector<4x512xf32>
    %cst_16 = arith.constant dense<0.000000e+00> : vector<4xf32>
    %16 = vector.multi_reduction <add>, %15, %cst_16 [1] : vector<4x512xf32> to vector<4xf32>
    %17 = vector.shape_cast %16 : vector<4xf32> to vector<4x1xf32>
    %18 = vector.shape_cast %17 : vector<4x1xf32> to vector<1x4x1xf32>
    %c0_17 = arith.constant 0 : index
    %c0_18 = arith.constant 0 : index
    %c0_19 = arith.constant 0 : index
    %19 = vector.load %arg8[%c0_17, %c0_18, %c0_19] : memref<1x4x1xf32, #tpu.memory_space<vmem>>, vector<1x4x1xf32>
    tpu.vector_store %arg8[%c0_17, %c0_18, %c0_19], %18 {strides = array<i32>} : memref<1x4x1xf32, #tpu.memory_space<vmem>>, vector<1x4x1xf32>,
    return
  }
  func.func @transform_0(%arg0: i32) -> (i32, i32) {
    %c0_i32 = arith.constant 0 : i32
    %c0_i32_0 = arith.constant 0 : i32
    return %c0_i32, %arg0 : i32, i32
  }
  func.func @transform_1(%arg0: i32) -> (i32, i32) {
    %c0_i32 = arith.constant 0 : i32
    %c0_i32_0 = arith.constant 0 : i32
    return %c0_i32, %arg0 : i32, i32
  }
  func.func @transform_2(%arg0: i32) -> (i32, i32) {
    %c0_i32 = arith.constant 0 : i32
    %c0_i32_0 = arith.constant 0 : i32
    %c0_i32_1 = arith.constant 0 : i32
    return %c0_i32, %c0_i32_0 : i32, i32
  }
  func.func @transform_3(%arg0: i32) -> (i32, i32) {
    %c0_i32 = arith.constant 0 : i32
    %c0_i32_0 = arith.constant 0 : i32
    %c0_i32_1 = arith.constant 0 : i32
    return %c0_i32, %c0_i32_0 : i32, i32
  }
  func.func @transform_4(%arg0: i32) -> (i32, i32) {
    %c0_i32 = arith.constant 0 : i32
    %c0_i32_0 = arith.constant 0 : i32
    %c0_i32_1 = arith.constant 0 : i32
    return %c0_i32, %c0_i32_0 : i32, i32
  }
  func.func @transform_5(%arg0: i32) -> (i32, i32) {
    %c0_i32 = arith.constant 0 : i32
    %c0_i32_0 = arith.constant 0 : i32
    return %c0_i32, %arg0 : i32, i32
  }
  func.func @transform_6(%arg0: i32) -> (i32, i32, i32) {
    %c0_i32 = arith.constant 0 : i32
    %c0_i32_0 = arith.constant 0 : i32
    %c0_i32_1 = arith.constant 0 : i32
    return %arg0, %c0_i32, %c0_i32_0 : i32, i32, i32
  }
  func.func @transform_7(%arg0: i32) -> (i32, i32, i32) {
    %c0_i32 = arith.constant 0 : i32
    %c0_i32_0 = arith.constant 0 : i32
    %c0_i32_1 = arith.constant 0 : i32
    return %arg0, %c0_i32, %c0_i32_0 : i32, i32, i32
  }
}

module attributes {stable_mosaic.version = 11 : i64} {
  func.func @bn_relu_kernel(%arg0: i32, %arg1: memref<4x512xf32, #tpu.memory_space<vmem>>, %arg2: memref<4x1xf32, #tpu.memory_space<vmem>>, %arg3: memref<4x1xf32, #tpu.memory_space<vmem>>, %arg4: memref<4x512xf32, #tpu.memory_space<vmem>>) attributes {dimension_semantics = [#tpu.dimension_semantics<parallel>], iteration_bounds = array<i64: 4>, scalar_prefetch = 0 : i64, scratch_operands = 0 : i64, tpu.core_type = #tpu.core_type<tc>, window_params = [{transform_indices = @transform_0, window_bounds = array<i64: 4, 512>}, {pipeline_mode = #tpu.pipeline_mode<synchronous>, transform_indices = @transform_1, window_bounds = array<i64: 4, 1>}, {pipeline_mode = #tpu.pipeline_mode<synchronous>, transform_indices = @transform_2, window_bounds = array<i64: 4, 1>}, {transform_indices = @transform_3, window_bounds = array<i64: 4, 512>}]} {
    %c0 = arith.constant 0 : index
    %c0_0 = arith.constant 0 : index
    %0 = vector.load %arg1[%c0, %c0_0] : memref<4x512xf32, #tpu.memory_space<vmem>>, vector<4x512xf32>
    %c0_1 = arith.constant 0 : index
    %c0_2 = arith.constant 0 : index
    %1 = vector.load %arg2[%c0_1, %c0_2] : memref<4x1xf32, #tpu.memory_space<vmem>>, vector<4x1xf32>
    %2 = vector.broadcast %1 : vector<4x1xf32> to vector<4x512xf32>
    %3 = arith.mulf %0, %2 : vector<4x512xf32>
    %c0_3 = arith.constant 0 : index
    %c0_4 = arith.constant 0 : index
    %4 = vector.load %arg3[%c0_3, %c0_4] : memref<4x1xf32, #tpu.memory_space<vmem>>, vector<4x1xf32>
    %5 = vector.broadcast %4 : vector<4x1xf32> to vector<4x512xf32>
    %6 = arith.addf %3, %5 : vector<4x512xf32>
    %cst = arith.constant 0.000000e+00 : f32
    %7 = vector.broadcast %cst : f32 to vector<4x512xf32>
    %8 = arith.maximumf %6, %7 : vector<4x512xf32>
    %c0_5 = arith.constant 0 : index
    %c0_6 = arith.constant 0 : index
    %9 = vector.load %arg4[%c0_5, %c0_6] : memref<4x512xf32, #tpu.memory_space<vmem>>, vector<4x512xf32>
    tpu.vector_store %arg4[%c0_5, %c0_6], %8 {strides = array<i32>} : memref<4x512xf32, #tpu.memory_space<vmem>>, vector<4x512xf32>,
    return
  }
  func.func @transform_0(%arg0: i32) -> (i32, i32) {
    %c0_i32 = arith.constant 0 : i32
    %c0_i32_0 = arith.constant 0 : i32
    return %c0_i32, %arg0 : i32, i32
  }
  func.func @transform_1(%arg0: i32) -> (i32, i32) {
    %c0_i32 = arith.constant 0 : i32
    %c0_i32_0 = arith.constant 0 : i32
    %c0_i32_1 = arith.constant 0 : i32
    return %c0_i32, %c0_i32_0 : i32, i32
  }
  func.func @transform_2(%arg0: i32) -> (i32, i32) {
    %c0_i32 = arith.constant 0 : i32
    %c0_i32_0 = arith.constant 0 : i32
    %c0_i32_1 = arith.constant 0 : i32
    return %c0_i32, %c0_i32_0 : i32, i32
  }
  func.func @transform_3(%arg0: i32) -> (i32, i32) {
    %c0_i32 = arith.constant 0 : i32
    %c0_i32_0 = arith.constant 0 : i32
    return %c0_i32, %arg0 : i32, i32
  }
}

module attributes {stable_mosaic.version = 11 : i64} {
  func.func @conv3x3_stats_kernel(%arg0: i32, %arg1: memref<36x512xf32, #tpu.memory_space<vmem>>, %arg2: memref<4x36xf32, #tpu.memory_space<vmem>>, %arg3: memref<4x1xf32, #tpu.memory_space<vmem>>, %arg4: memref<4x512xf32, #tpu.memory_space<vmem>>, %arg5: memref<1x4x1xf32, #tpu.memory_space<vmem>>, %arg6: memref<1x4x1xf32, #tpu.memory_space<vmem>>) attributes {dimension_semantics = [#tpu.dimension_semantics<parallel>], iteration_bounds = array<i64: 4>, scalar_prefetch = 0 : i64, scratch_operands = 0 : i64, tpu.core_type = #tpu.core_type<tc>, window_params = [{transform_indices = @transform_0, window_bounds = array<i64: 36, 512>}, {pipeline_mode = #tpu.pipeline_mode<synchronous>, transform_indices = @transform_1, window_bounds = array<i64: 4, 36>}, {pipeline_mode = #tpu.pipeline_mode<synchronous>, transform_indices = @transform_2, window_bounds = array<i64: 4, 1>}, {transform_indices = @transform_3, window_bounds = array<i64: 4, 512>}, {transform_indices = @transform_4, window_bounds = array<i64: 1, 4, 1>}, {transform_indices = @transform_5, window_bounds = array<i64: 1, 4, 1>}]} {
    %c0 = arith.constant 0 : index
    %c0_0 = arith.constant 0 : index
    %0 = vector.load %arg2[%c0, %c0_0] : memref<4x36xf32, #tpu.memory_space<vmem>>, vector<4x36xf32>
    %c0_1 = arith.constant 0 : index
    %c0_2 = arith.constant 0 : index
    %1 = vector.load %arg1[%c0_1, %c0_2] : memref<36x512xf32, #tpu.memory_space<vmem>>, vector<36x512xf32>
    %cst = arith.constant dense<0.000000e+00> : vector<4x512xf32>
    %2 = tpu.matmul %0, %1, %cst {dimension_numbers = #tpu.dot_dimension_numbers<[1], [0], [0], [1], [0, 0, 1, 1], [], []>} : vector<4x36xf32>, vector<36x512xf32>, vector<4x512xf32> -> vector<4x512xf32>
    %c0_3 = arith.constant 0 : index
    %c0_4 = arith.constant 0 : index
    %3 = vector.load %arg3[%c0_3, %c0_4] : memref<4x1xf32, #tpu.memory_space<vmem>>, vector<4x1xf32>
    %4 = vector.broadcast %3 : vector<4x1xf32> to vector<4x512xf32>
    %5 = arith.addf %2, %4 : vector<4x512xf32>
    %c0_5 = arith.constant 0 : index
    %c0_6 = arith.constant 0 : index
    %6 = vector.load %arg4[%c0_5, %c0_6] : memref<4x512xf32, #tpu.memory_space<vmem>>, vector<4x512xf32>
    tpu.vector_store %arg4[%c0_5, %c0_6], %5 {strides = array<i32>} : memref<4x512xf32, #tpu.memory_space<vmem>>, vector<4x512xf32>,
    %cst_7 = arith.constant dense<0.000000e+00> : vector<4xf32>
    %7 = vector.multi_reduction <add>, %5, %cst_7 [1] : vector<4x512xf32> to vector<4xf32>
    %8 = vector.shape_cast %7 : vector<4xf32> to vector<4x1xf32>
    %9 = vector.shape_cast %8 : vector<4x1xf32> to vector<1x4x1xf32>
    %c0_8 = arith.constant 0 : index
    %c0_9 = arith.constant 0 : index
    %c0_10 = arith.constant 0 : index
    %10 = vector.load %arg5[%c0_8, %c0_9, %c0_10] : memref<1x4x1xf32, #tpu.memory_space<vmem>>, vector<1x4x1xf32>
    tpu.vector_store %arg5[%c0_8, %c0_9, %c0_10], %9 {strides = array<i32>} : memref<1x4x1xf32, #tpu.memory_space<vmem>>, vector<1x4x1xf32>,
    %11 = arith.mulf %5, %5 : vector<4x512xf32>
    %cst_11 = arith.constant dense<0.000000e+00> : vector<4xf32>
    %12 = vector.multi_reduction <add>, %11, %cst_11 [1] : vector<4x512xf32> to vector<4xf32>
    %13 = vector.shape_cast %12 : vector<4xf32> to vector<4x1xf32>
    %14 = vector.shape_cast %13 : vector<4x1xf32> to vector<1x4x1xf32>
    %c0_12 = arith.constant 0 : index
    %c0_13 = arith.constant 0 : index
    %c0_14 = arith.constant 0 : index
    %15 = vector.load %arg6[%c0_12, %c0_13, %c0_14] : memref<1x4x1xf32, #tpu.memory_space<vmem>>, vector<1x4x1xf32>
    tpu.vector_store %arg6[%c0_12, %c0_13, %c0_14], %14 {strides = array<i32>} : memref<1x4x1xf32, #tpu.memory_space<vmem>>, vector<1x4x1xf32>,
    return
  }
  func.func @transform_0(%arg0: i32) -> (i32, i32) {
    %c0_i32 = arith.constant 0 : i32
    %c0_i32_0 = arith.constant 0 : i32
    return %c0_i32, %arg0 : i32, i32
  }
  func.func @transform_1(%arg0: i32) -> (i32, i32) {
    %c0_i32 = arith.constant 0 : i32
    %c0_i32_0 = arith.constant 0 : i32
    %c0_i32_1 = arith.constant 0 : i32
    return %c0_i32, %c0_i32_0 : i32, i32
  }
  func.func @transform_2(%arg0: i32) -> (i32, i32) {
    %c0_i32 = arith.constant 0 : i32
    %c0_i32_0 = arith.constant 0 : i32
    %c0_i32_1 = arith.constant 0 : i32
    return %c0_i32, %c0_i32_0 : i32, i32
  }
  func.func @transform_3(%arg0: i32) -> (i32, i32) {
    %c0_i32 = arith.constant 0 : i32
    %c0_i32_0 = arith.constant 0 : i32
    return %c0_i32, %arg0 : i32, i32
  }
  func.func @transform_4(%arg0: i32) -> (i32, i32, i32) {
    %c0_i32 = arith.constant 0 : i32
    %c0_i32_0 = arith.constant 0 : i32
    %c0_i32_1 = arith.constant 0 : i32
    return %arg0, %c0_i32, %c0_i32_0 : i32, i32, i32
  }
  func.func @transform_5(%arg0: i32) -> (i32, i32, i32) {
    %c0_i32 = arith.constant 0 : i32
    %c0_i32_0 = arith.constant 0 : i32
    %c0_i32_1 = arith.constant 0 : i32
    return %arg0, %c0_i32, %c0_i32_0 : i32, i32, i32
  }
}

</mosaic_0001>

<llo_original>
// kernel: tile.0
$region0: #{tile.0}
  %s0 = inlined_call_operand.vmem [shape: f32[4,1,1,4], index: 0, kind: input, shape index: {}]
  %s1 = inlined_call_operand.vmem [shape: f32[16,1], index: 1, kind: output, shape index: {}]
  $region1: #{tile.0} parent=0
    #allocation0 [shape = 'u8[4096]{0}', space=vmem, size = 0x1000, scoped, tag = 'scoped mem for input reshape']
    %s3 = sshll.u32 1, 4
    %s4 = ssub.s32 %s3, 1
    %v5 = vld [vmem:[%s0] sm:%s4]
    %6 = vst [vmem:[#allocation0] sm:%s4] %v5
    %v7 = vld [vmem:[#allocation0] sm:$0xf]
    %vm8 = vcmask 7168
    %9 = vst.msk [vmem:[%s1] ss:$4 sm:$0xf] %vm8, %v7
    %v10 = vld [vmem:[#allocation0] sm:$0xf]
    %11 = vrot.lane.b32.xlu0 %v10, 127
    %v12 = vpop.permute.xlu0 %11
    %vm13 = vcmask 7168
    %s14 = scalar_lea.vmem %s1, 1
    %15 = vst.msk [vmem:[%s14] ss:$4 sm:$0xf] %vm13, %v12
    %v16 = vld [vmem:[#allocation0] sm:$0xf]
    %17 = vrot.lane.b32.xlu0 %v16, 126
    %v18 = vpop.permute.xlu0 %17
    %vm19 = vcmask 7168
    %s20 = scalar_lea.vmem %s1, 2
    %21 = vst.msk [vmem:[%s20] ss:$4 sm:$0xf] %vm19, %v18
    %v22 = vld [vmem:[#allocation0] sm:$0xf]
    %23 = vrot.lane.b32.xlu0 %v22, 125
    %v24 = vpop.permute.xlu0 %23
    %vm25 = vcmask 7168
    %s26 = scalar_lea.vmem %s1, 3
    %27 = vst.msk [vmem:[%s26] ss:$4 sm:$0xf] %vm25, %v24

// kernel: tile.6
$region0: #{tile.6}
  #allocation2 [shape = 's32[1]{0}', space=sflag, size = 0x4, scoped, tag = 'scoped memory for tile.6']
  %s0 = inlined_call_operand.hbm [shape: f32[4], index: 0, kind: input, shape index: {}]
  %s1 = inlined_call_operand.vmem [shape: f32[4,1,1,4], index: 1, kind: output, shape index: {}]
  $region1: #{tile.6} parent=0
    #allocation0 [shape = 'u8[512]{0}', space=vmem, size = 0x400, scoped, tag = 'operand span for operand 0']
    #allocation1 [shape = 's32[1]{0}', space=sflag, size = 0x4, scoped, tag = 'scoped memory for tile.6']
    %2 = vsyncpa [#allocation1], 0
    // Predicated region
    $region2: #{tile.6} parent=1 // pred_check
      _
    $region3: #{tile.6} parent=1 // pred_check_branch
      %4 = sbr.rel (0) target = $region5
    $region4: #{tile.6} parent=1 // pred_region
      %s6 = ssub.s32 16, 16
      %7 = vsyncadd [#allocation1], %s6
      %s9 = sshll.u32 [#allocation0], 4
      %s10 = int_to_ptr.vmem [resolvable:$true] %s9
      %12 = dma.hbm_to_vmem [thread:$0]  %s0, 16, %s10, [#allocation1]
    $region5: #{tile.6} parent=1 // pred_fallthru
      _
    // Predicated region
    $region6: #{tile.6} parent=1 // pred_check
      _
    $region7: #{tile.6} parent=1 // pred_check_branch
      %14 = sbr.rel (0) target = $region9
    $region8: #{tile.6} parent=1 // pred_region
      %15 = dma.done [#allocation1], 16
    $region9: #{tile.6} parent=1 // pred_fallthru
      _
    %v16 = vld [vmem:[#allocation0] ss:$0 sm:$0xff]
    %17 = vst [vmem:[%s1] sm:$0xf] %v16
    %18 = vsyncpa [#allocation1], 1

// kernel: decoder_forward.5
$region0: #{decoder_forward.5}
  #allocation0 [shape = 'u32[]', space=smem, size = 0x4, offset = 0x4, fixed_abs, tag = 'smem constant byte address 0x4 - core index']
  #allocation1 [shape = 'u32[144,128]{1,0:T(1,128)}', space=vmem, size = 0x12000, scoped, tag = 'internal scratch']
  %s0 = inlined_call_operand.vmem [shape: f32[8,512], index: 0, kind: input, shape index: {}]
  %s1 = inlined_call_operand.vmem [shape: f32[16,8], index: 1, kind: input, shape index: {}]
  %s2 = inlined_call_operand.vmem [shape: f32[16,1], index: 2, kind: input, shape index: {}]
  %s3 = inlined_call_operand.vmem [shape: f32[16,512], index: 3, kind: output, shape index: {}]
  %s4 = sld [smem:[#allocation0]]
  $region22: #{decoder_forward.5} parent=0
    _
  %s6 = ssub.s32 1, %s4
  %s7 = scalar_select 0, %s6, %s4
  // Predicated region
  $region2: #{decoder_forward.5} parent=0 // pred_check
    _
  $region3: #{decoder_forward.5} parent=0 // pred_check_branch
    %9 = sbr.rel (0) target = $region5
  $region4: #{decoder_forward.5} parent=0 // pred_region
    _
  $region5: #{decoder_forward.5} parent=0 // pred_fallthru
    _
  // Predicated region
  $region6: #{decoder_forward.5} parent=0 // pred_check
    _
  $region7: #{decoder_forward.5} parent=0 // pred_check_branch
    %11 = sbr.rel (0) target = $region9
  $region8: #{decoder_forward.5} parent=0 // pred_region
    _
  $region9: #{decoder_forward.5} parent=0 // pred_fallthru
    _
  // Predicated region
  $region10: #{decoder_forward.5} parent=0 // pred_check
    _
  $region11: #{decoder_forward.5} parent=0 // pred_check_branch
    %13 = sbr.rel (0) target = $region13
  $region12: #{decoder_forward.5} parent=0 // pred_region
    _
  $region13: #{decoder_forward.5} parent=0 // pred_fallthru
    _
  %v14 = vld [vmem:[%s1] sm:$0xff]
  %v15 = vld [vmem:[%s1 + $0x8] sm:$0xff]
  %v16 = vld [vmem:[%s0] sm:$0xff]
  %v17 = vld [vmem:[%s0 + $0x8] sm:$0xff]
  %v18 = vld [vmem:[%s0 + $0x10] sm:$0xff]
  %v19 = vld [vmem:[%s0 + $0x18] sm:$0xff]
  %v20 = vld [vmem:[%s2] sm:$0xff]
  %v21 = vld [vmem:[%s2 + $0x8] sm:$0xff]
  %23 = vset.pattern.permute.xlu0 0
  %24 = vperm.xlu0 %23, %v20
  %v25 = vpop.permute.xlu0 %24
  %28 = vset.pattern.permute.xlu0 0
  %29 = vperm.xlu0 %28, %v21
  %v30 = vpop.permute.xlu0 %29
  %vm32 = vcmask 64512
  %v34 = vsel %vm32, %v14, 0
  %v37 = vsel %vm32, %v15, 0
  %39 = vmatprep.subr.mxu0 0.0
  %40 = vmatpush1.msra.mxu0 0.0
  %41 = vmatprep.subr.mxu0 0.0
  %42 = vmatpush1.msra.mxu0 0.0
  %43 = vmatprep.subr.mxu0 0.0
  %44 = vmatpush1.msra.mxu0 0.0
  %45 = vmatprep.subr.mxu0 0.0
  %46 = vmatpush1.msra.mxu0 0.0
  %47 = vmatprep.subr.mxu0 0.0
  %48 = vmatpush1.msra.mxu0 0.0
  %49 = vmatprep.subr.mxu0 0.0
  %50 = vmatpush1.msra.mxu0 0.0
  %51 = vmatprep.subr.mxu0 0.0
  %52 = vmatpush1.msra.mxu0 0.0
  %53 = vmatprep.subr.mxu0 0.0
  %54 = vmatpush1.msra.mxu0 0.0
  %55 = vmatprep.subr.mxu0 0.0
  %56 = vmatpush1.msra.mxu0 0.0
  %57 = vmatprep.subr.mxu0 0.0
  %58 = vmatpush1.msra.mxu0 0.0
  %59 = vmatprep.subr.mxu0 0.0
  %60 = vmatpush1.msra.mxu0 0.0
  %61 = vmatprep.subr.mxu0 0.0
  %62 = vmatpush1.msra.mxu0 0.0
  %63 = vmatprep.subr.mxu0 0.0
  %64 = vmatpush1.msra.mxu0 0.0
  %65 = vmatprep.subr.mxu0 0.0
  %66 = vmatpush1.msra.mxu0 0.0
  %67 = vmatprep.subr.mxu0 0.0
  %68 = vmatpush1.msra.mxu0 0.0
  %69 = vmatprep.subr.mxu0 %v17
  %70 = vmatpush1.msra.mxu0 %v16
  %71 = vmatprep.subr.mxu0 0.0
  %72 = vmatpush2.msra.mxu0 0.0
  %73 = vmatprep.subr.mxu0 0.0
  %74 = vmatpush2.msra.mxu0 0.0
  %75 = vmatprep.subr.mxu0 0.0
  %76 = vmatpush2.msra.mxu0 0.0
  %77 = vmatprep.subr.mxu0 0.0
  %78 = vmatpush2.msra.mxu0 0.0
  %79 = vmatprep.subr.mxu0 0.0
  %80 = vmatpush2.msra.mxu0 0.0
  %81 = vmatprep.subr.mxu0 0.0
  %82 = vmatpush2.msra.mxu0 0.0
  %83 = vmatprep.subr.mxu0 0.0
  %84 = vmatpush2.msra.mxu0 0.0
  %85 = vmatprep.subr.mxu0 0.0
  %86 = vmatpush2.msra.mxu0 0.0
  %87 = vmatprep.subr.mxu0 0.0
  %88 = vmatpush2.msra.mxu0 0.0
  %89 = vmatprep.subr.mxu0 0.0
  %90 = vmatpush2.msra.mxu0 0.0
  %91 = vmatprep.subr.mxu0 0.0
  %92 = vmatpush2.msra.mxu0 0.0
  %93 = vmatprep.subr.mxu0 0.0
  %94 = vmatpush2.msra.mxu0 0.0
  %95 = vmatprep.subr.mxu0 0.0
  %96 = vmatpush2.msra.mxu0 0.0
  %97 = vmatprep.subr.mxu0 0.0
  %98 = vmatpush2.msra.mxu0 0.0
  %99 = vmatprep.subr.mxu0 0.0
  %100 = vmatpush2.msra.mxu0 0.0
  %101 = vmatprep.subr.mxu0 0.0
  %102 = vmatpush2.msra.mxu0 0.0
  %103 = vmatprep.mubr.f32.mxu0 0.0
  %104 = vmatmul.mubr.f32.gmra.mxu0 %v34
  %v105 = vpop.f32.mrf.mxu0
  %v106 = vadd.f32 %v25, %v105
  %v107 = vpop.f32.mrf.mxu0
  %v108 = vadd.f32 %v25, %v107
  %109 = vmatprep.mubr.f32.mxu0 0.0
  %110 = vmatmul.mubr.f32.gmra.mxu0 %v37
  %v111 = vpop.f32.mrf.mxu0
  %v112 = vadd.f32 %v30, %v111
  %v113 = vpop.f32.mrf.mxu0
  %v114 = vadd.f32 %v30, %v113
  %115 = vdwg.mxu0
  %116 = vmatprep.subr.mxu0 0.0
  %117 = vmatpush1.msra.mxu0 0.0
  %118 = vmatprep.subr.mxu0 0.0
  %119 = vmatpush1.msra.mxu0 0.0
  %120 = vmatprep.subr.mxu0 0.0
  %121 = vmatpush1.msra.mxu0 0.0
  %122 = vmatprep.subr.mxu0 0.0
  %123 = vmatpush1.msra.mxu0 0.0
  %124 = vmatprep.subr.mxu0 0.0
  %125 = vmatpush1.msra.mxu0 0.0
  %126 = vmatprep.subr.mxu0 0.0
  %127 = vmatpush1.msra.mxu0 0.0
  %128 = vmatprep.subr.mxu0 0.0
  %129 = vmatpush1.msra.mxu0 0.0
  %130 = vmatprep.subr.mxu0 0.0
  %131 = vmatpush1.msra.mxu0 0.0
  %132 = vmatprep.subr.mxu0 0.0
  %133 = vmatpush1.msra.mxu0 0.0
  %134 = vmatprep.subr.mxu0 0.0
  %135 = vmatpush1.msra.mxu0 0.0
  %136 = vmatprep.subr.mxu0 0.0
  %137 = vmatpush1.msra.mxu0 0.0
  %138 = vmatprep.subr.mxu0 0.0
  %139 = vmatpush1.msra.mxu0 0.0
  %140 = vmatprep.subr.mxu0 0.0
  %141 = vmatpush1.msra.mxu0 0.0
  %142 = vmatprep.subr.mxu0 0.0
  %143 = vmatpush1.msra.mxu0 0.0
  %144 = vmatprep.subr.mxu0 0.0
  %145 = vmatpush1.msra.mxu0 0.0
  %146 = vmatprep.subr.mxu0 %v19
  %147 = vmatpush1.msra.mxu0 %v18
  %148 = vmatprep.subr.mxu0 0.0
  %149 = vmatpush2.msra.mxu0 0.0
  %150 = vmatprep.subr.mxu0 0.0
  %151 = vmatpush2.msra.mxu0 0.0
  %152 = vmatprep.subr.mxu0 0.0
  %153 = vmatpush2.msra.mxu0 0.0
  %154 = vmatprep.subr.mxu0 0.0
  %155 = vmatpush2.msra.mxu0 0.0
  %156 = vmatprep.subr.mxu0 0.0
  %157 = vmatpush2.msra.mxu0 0.0
  %158 = vmatprep.subr.mxu0 0.0
  %159 = vmatpush2.msra.mxu0 0.0
  %160 = vmatprep.subr.mxu0 0.0
  %161 = vmatpush2.msra.mxu0 0.0
  %162 = vmatprep.subr.mxu0 0.0
  %163 = vmatpush2.msra.mxu0 0.0
  %164 = vmatprep.subr.mxu0 0.0
  %165 = vmatpush2.msra.mxu0 0.0
  %166 = vmatprep.subr.mxu0 0.0
  %167 = vmatpush2.msra.mxu0 0.0
  %168 = vmatprep.subr.mxu0 0.0
  %169 = vmatpush2.msra.mxu0 0.0
  %170 = vmatprep.subr.mxu0 0.0
  %171 = vmatpush2.msra.mxu0 0.0
  %172 = vmatprep.subr.mxu0 0.0
  %173 = vmatpush2.msra.mxu0 0.0
  %174 = vmatprep.subr.mxu0 0.0
  %175 = vmatpush2.msra.mxu0 0.0
  %176 = vmatprep.subr.mxu0 0.0
  %177 = vmatpush2.msra.mxu0 0.0
  %178 = vmatprep.subr.mxu0 0.0
  %179 = vmatpush2.msra.mxu0 0.0
  %180 = vmatprep.mubr.f32.mxu0 0.0
  %181 = vmatmul.mubr.f32.gmra.mxu0 %v34
  %v182 = vpop.f32.mrf.mxu0
  %v183 = vadd.f32 %v25, %v182
  %v184 = vpop.f32.mrf.mxu0
  %v185 = vadd.f32 %v25, %v184
  %186 = vmatprep.mubr.f32.mxu0 0.0
  %187 = vmatmul.mubr.f32.gmra.mxu0 %v37
  %v188 = vpop.f32.mrf.mxu0
  %v189 = vadd.f32 %v30, %v188
  %v190 = vpop.f32.mrf.mxu0
  %v191 = vadd.f32 %v30, %v190
  %192 = vdwg.mxu0
  %193 = vst [vmem:[%s3] sm:$0xff] %v106
  %194 = vst [vmem:[%s3 + $0x8] sm:$0xff] %v108
  %195 = vst [vmem:[%s3 + $0x10] sm:$0xff] %v183
  %196 = vst [vmem:[%s3 + $0x18] sm:$0xff] %v185
  %197 = vst [vmem:[%s3 + $0x20] sm:$0xff] %v112
  %198 = vst [vmem:[%s3 + $0x28] sm:$0xff] %v114
  %199 = vst [vmem:[%s3 + $0x30] sm:$0xff] %v189
  %200 = vst [vmem:[%s3 + $0x38] sm:$0xff] %v191
  // Predicated region
  $region14: #{decoder_forward.5} parent=0 // pred_check
    _
  $region15: #{decoder_forward.5} parent=0 // pred_check_branch
    %202 = sbr.rel (0) target = $region17
  $region16: #{decoder_forward.5} parent=0 // pred_region
    _
  $region17: #{decoder_forward.5} parent=0 // pred_fallthru
    _
  // Predicated region
  $region18: #{decoder_forward.5} parent=0 // pred_check
    _
  $region19: #{decoder_forward.5} parent=0 // pred_check_branch
    %204 = sbr.rel (0) target = $region21
  $region20: #{decoder_forward.5} parent=0 // pred_region
    _
  $region21: #{decoder_forward.5} parent=0 // pred_fallthru
    _

// kernel: decoder_forward.7
$region0: #{decoder_forward.7}
  #allocation0 [shape = 'u32[]', space=smem, size = 0x4, offset = 0x4, fixed_abs, tag = 'smem constant byte address 0x4 - core index']
  #allocation1 [shape = 'u32[144,128]{1,0:T(1,128)}', space=vmem, size = 0x12000, scoped, tag = 'internal scratch']
  %s0 = inlined_call_operand.vmem [shape: f32[4,2048], index: 0, kind: input, shape index: {}]
  %s1 = inlined_call_operand.vmem [shape: f32[4,1], index: 1, kind: input, shape index: {}]
  %s2 = inlined_call_operand.vmem [shape: f32[4,1], index: 2, kind: input, shape index: {}]
  %s3 = inlined_call_operand.vmem [shape: f32[4,2048], index: 3, kind: output, shape index: {}]
  %s4 = sld [smem:[#allocation0]]
  $region45: #{decoder_forward.7} parent=0
    _
  %s6 = ssub.s32 1, %s4
  %s7 = scalar_select 0, %s6, %s4
  loop: start=0, step=1, limit=6
  $region2: #{decoder_forward.7} parent=0 // loop_pre_header
    _
  $region3: #{decoder_forward.7} parent=0 // loop_header
    %s9 = sphi 0, %s13
    %p10 = scmp.ge.s32.totalorder %s9, 6
    %s19 = sphi 0, %s21
    %s22 = sphi 0, %s19
    %s23 = sphi 0, %s22
    %s39 = sphi 0, %s23
    %s43 = sphi 0, %s43
    %s45 = sphi 0, %s43
    %s46 = sphi 0, %s45
    %s60 = sphi 0, %s46
    %s64 = sphi 0, %s64
    %s66 = sphi 0, %s64
    %s67 = sphi 0, %s66
    %s81 = sphi 0, %s67
    %s87 = sphi 0, %s89
    %s90 = sphi 0, %s87
    %s91 = sphi 0, %s90
    %s107 = sphi 0, %s91
  $region4: #{decoder_forward.7} parent=0 // loop_header_branch
    %12 = sbr.rel (%p10) target = $region8
  $region5: #{decoder_forward.7} parent=0 // loop_body
    %s14 = ssub.s32 %s9, 1
    %s15 = ssub.s32 %s9, 2
    %s16 = sadd.s32 %s9, 1
    %s17 = ssub.s32 %s9, %s16
    %p18 = scmp.eq.s32.totalorder %s17, 0
    %s20 = sadd.s32 %s19, 1
    %s21 = scalar_select %p18, %s19, %s20
    %p24 = pneg %p18
    %p25 = scmp.eq.s32.totalorder %s9, 3
    %p26 = por %p24, %p25
    %p27 = scmp.ne.s32.totalorder %s19, %s22
    %p28 = scmp.eq.s32.totalorder %s9, 0
    %p29 = por %p27, %p28
    %p30 = scmp.ne.s32.totalorder %s19, %s22
    %p31 = scmp.eq.s32.totalorder %s14, 3
    %p32 = por %p30, %p31
    %p33 = scmp.ne.s32.totalorder %s22, %s23
    %p34 = scmp.eq.s32.totalorder %s14, 0
    %p35 = por %p33, %p34
    %p36 = scmp.ne.s32.totalorder %s22, %s23
    %p37 = scmp.eq.s32.totalorder %s15, 3
    %p38 = por %p36, %p37
    %p40 = scmp.ne.s32.totalorder %s23, %s39
    %p41 = scmp.eq.s32.totalorder %s15, 0
    %p42 = por %p40, %p41
    %s44 = sadd.s32 %s43, 1
    %p47 = scmp.eq.s32.totalorder %s9, 3
    %p48 = scmp.ne.s32.totalorder %s43, %s45
    %p49 = scmp.eq.s32.totalorder %s9, 0
    %p50 = por %p48, %p49
    %p51 = scmp.ne.s32.totalorder %s43, %s45
    %p52 = scmp.eq.s32.totalorder %s14, 3
    %p53 = por %p51, %p52
    %p54 = scmp.ne.s32.totalorder %s45, %s46
    %p55 = scmp.eq.s32.totalorder %s14, 0
    %p56 = por %p54, %p55
    %p57 = scmp.ne.s32.totalorder %s45, %s46
    %p58 = scmp.eq.s32.totalorder %s15, 3
    %p59 = por %p57, %p58
    %p61 = scmp.ne.s32.totalorder %s46, %s60
    %p62 = scmp.eq.s32.totalorder %s15, 0
    %p63 = por %p61, %p62
    %s65 = sadd.s32 %s64, 1
    %p68 = scmp.eq.s32.totalorder %s9, 3
    %p69 = scmp.ne.s32.totalorder %s64, %s66
    %p70 = scmp.eq.s32.totalorder %s9, 0
    %p71 = por %p69, %p70
    %p72 = scmp.ne.s32.totalorder %s64, %s66
    %p73 = scmp.eq.s32.totalorder %s14, 3
    %p74 = por %p72, %p73
    %p75 = scmp.ne.s32.totalorder %s66, %s67
    %p76 = scmp.eq.s32.totalorder %s14, 0
    %p77 = por %p75, %p76
    %p78 = scmp.ne.s32.totalorder %s66, %s67
    %p79 = scmp.eq.s32.totalorder %s15, 3
    %p80 = por %p78, %p79
    %p82 = scmp.ne.s32.totalorder %s67, %s81
    %p83 = scmp.eq.s32.totalorder %s15, 0
    %p84 = por %p82, %p83
    %s85 = ssub.s32 %s9, %s16
    %p86 = scmp.eq.s32.totalorder %s85, 0
    %s88 = sadd.s32 %s87, 1
    %s89 = scalar_select %p86, %s87, %s88
    %p92 = pneg %p86
    %p93 = scmp.eq.s32.totalorder %s9, 3
    %p94 = por %p92, %p93
    %p95 = scmp.ne.s32.totalorder %s87, %s90
    %p96 = scmp.eq.s32.totalorder %s9, 0
    %p97 = por %p95, %p96
    %p98 = scmp.ne.s32.totalorder %s87, %s90
    %p99 = scmp.eq.s32.totalorder %s14, 3
    %p100 = por %p98, %p99
    %p101 = scmp.ne.s32.totalorder %s90, %s91
    %p102 = scmp.eq.s32.totalorder %s14, 0
    %p103 = por %p101, %p102
    %p104 = scmp.ne.s32.totalorder %s90, %s91
    %p105 = scmp.eq.s32.totalorder %s15, 3
    %p106 = por %p104, %p105
    %p108 = scmp.ne.s32.totalorder %s91, %s107
    %p109 = scmp.eq.s32.totalorder %s15, 0
    %p110 = por %p108, %p109
    %p111 = scmp.le.s32.totalorder 1, %s9
    %p112 = scmp.lt.s32.totalorder %s9, 5
    %p113 = pnand %p111, %p112
    %p114 = pneg %p113
    // Predicated region
    $region9: #{decoder_forward.7} parent=5 // pred_check
      _
    $region10: #{decoder_forward.7} parent=5 // pred_check_branch
      %116 = sbr.rel (%p113) target = $region12
    $region11: #{decoder_forward.7} parent=5 // pred_region
      %s117 = ssub.s32 %s9, 1
      // Predicated region
      $region13: #{decoder_forward.7} parent=11 // pred_check
        %p118 = pneg %p56
      $region14: #{decoder_forward.7} parent=11 // pred_check_branch
        %120 = sbr.rel (%p118) target = $region16
      $region15: #{decoder_forward.7} parent=11 // pred_region
        _
      $region16: #{decoder_forward.7} parent=11 // pred_fallthru
        _
      // Predicated region
      $region17: #{decoder_forward.7} parent=11 // pred_check
        %p121 = pneg %p77
      $region18: #{decoder_forward.7} parent=11 // pred_check_branch
        %123 = sbr.rel (%p121) target = $region20
      $region19: #{decoder_forward.7} parent=11 // pred_region
        _
      $region20: #{decoder_forward.7} parent=11 // pred_fallthru
        _
    $region12: #{decoder_forward.7} parent=5 // pred_fallthru
      _
    %p124 = scmp.lt.s32.totalorder %s9, 4
    // Predicated region
    $region21: #{decoder_forward.7} parent=5 // pred_check
      %p125 = pneg %p124
    $region22: #{decoder_forward.7} parent=5 // pred_check_branch
      %127 = sbr.rel (%p125) target = $region24
    $region23: #{decoder_forward.7} parent=5 // pred_region
      // Predicated region
      $region25: #{decoder_forward.7} parent=23 // pred_check
        %p128 = pneg %p29
      $region26: #{decoder_forward.7} parent=23 // pred_check_branch
        %130 = sbr.rel (%p128) target = $region28
      $region27: #{decoder_forward.7} parent=23 // pred_region
        %s131 = smul.u32 4, %s9
        %p132 = scmp.lt.s32.totalorder %s131, 15
        %s133 = scalar_select %p132, %s131, 15
        %s134 = smul.addr %s133, 4
        %s135 = scalar_lea.vmem %s0, %s134
        %s136 = smul.u32 4, %s9
      $region28: #{decoder_forward.7} parent=23 // pred_fallthru
        _
    $region24: #{decoder_forward.7} parent=5 // pred_fallthru
      _
    %p137 = scmp.le.s32.totalorder 1, %s9
    %p138 = scmp.lt.s32.totalorder %s9, 5
    %p139 = pnand %p137, %p138
    %p140 = pneg %p139
    // Predicated region
    $region29: #{decoder_forward.7} parent=5 // pred_check
      _
    $region30: #{decoder_forward.7} parent=5 // pred_check_branch
      %142 = sbr.rel (%p139) target = $region32
    $region31: #{decoder_forward.7} parent=5 // pred_region
      %s143 = ssub.s32 %s9, 1
      %s144 = smul.u32 4, %s14
      %p145 = scmp.lt.s32.totalorder %s144, 15
      %s146 = scalar_select %p145, %s144, 15
      %s147 = smul.addr %s146, 4
      %s148 = scalar_lea.vmem %s0, %s147
      %p149 = pneg %p35
      %p150 = pneg %p32
      %p151 = pneg %p56
      %p152 = pneg %p53
      %p153 = pneg %p77
      %p154 = pneg %p74
      %p155 = pneg %p103
      %p156 = pneg %p100
      %s157 = smul.u32 4, %s14
      %p158 = scmp.lt.s32.totalorder %s157, 15
      %s159 = scalar_select %p158, %s157, 15
      %s160 = smul.addr %s159, 4
      %s161 = scalar_lea.vmem %s3, %s160
      %s162 = smul.u32 4, %s14
      %p163 = scmp.lt.s32.totalorder %s162, 15
      %s164 = scalar_select %p163, %s162, 15
      %s165 = smul.addr %s164, 4
      %s166 = scalar_lea.vmem %s0, %s165
      %s167 = smul.u32 4, %s14
      %s168 = smul.u32 4, %s14
      %p169 = scmp.lt.s32.totalorder %s168, 15
      %s170 = scalar_select %p169, %s168, 15
      %s171 = smul.addr %s170, 4
      %s172 = scalar_lea.vmem %s3, %s171
      %s173 = smul.u32 4, %s14
      %v174 = vld [vmem:[%s166] sm:$0xff]
      %v175 = vld [vmem:[%s166 + $0x8] sm:$0xff]
      %v176 = vld [vmem:[%s1] sm:$0xf]
      %178 = vset.pattern.permute.xlu0 0
      %179 = vperm.xlu0 %178, %v176
      %v180 = vpop.permute.xlu0 %179
      %v182 = vunpack.c.l.s4 839922192
      %v183 = vunpack.c.0.s8 %v182
      %v184 = vlaneseq
      %v185 = vshrl.u32 %v184, 7
      %v186 = vsub.s32 %v183, %v185
      %v187 = vrot.slane %v180, %v186
      %v189 = vmul.f32 %v174, %v187
      %v190 = vmul.f32 %v175, %v187
      %v191 = vld [vmem:[%s2] sm:$0xf]
      %193 = vset.pattern.permute.xlu0 0
      %194 = vperm.xlu0 %193, %v191
      %v195 = vpop.permute.xlu0 %194
      %v197 = vunpack.c.l.s4 839922192
      %v198 = vunpack.c.0.s8 %v197
      %v199 = vlaneseq
      %v200 = vshrl.u32 %v199, 7
      %v201 = vsub.s32 %v198, %v200
      %v202 = vrot.slane %v195, %v201
      %v204 = vadd.f32 %v189, %v202
      %v205 = vadd.f32 %v190, %v202
      %v206 = vmax.f32 %v204, 0.0
      %v207 = vmax.f32 %v205, 0.0
      %208 = vst [vmem:[%s172] sm:$0xff] %v206
      %209 = vst [vmem:[%s172 + $0x8] sm:$0xff] %v207
      %s210 = smul.u32 4, %s14
      %p211 = scmp.lt.s32.totalorder %s210, 15
      %s212 = scalar_select %p211, %s210, 15
      %s213 = smul.addr %s212, 4
      %s214 = scalar_lea.vmem %s3, %s213
      // Predicated region
      $region33: #{decoder_forward.7} parent=31 // pred_check
        %p215 = pneg %p100
      $region34: #{decoder_forward.7} parent=31 // pred_check_branch
        %217 = sbr.rel (%p215) target = $region36
      $region35: #{decoder_forward.7} parent=31 // pred_region
        %s218 = smul.u32 4, %s14
      $region36: #{decoder_forward.7} parent=31 // pred_fallthru
        _
    $region32: #{decoder_forward.7} parent=5 // pred_fallthru
      _
    %p219 = scmp.le.s32.totalorder 2, %s9
    // Predicated region
    $region37: #{decoder_forward.7} parent=5 // pred_check
      %p220 = pneg %p219
    $region38: #{decoder_forward.7} parent=5 // pred_check_branch
      %222 = sbr.rel (%p220) target = $region40
    $region39: #{decoder_forward.7} parent=5 // pred_region
      %s223 = ssub.s32 %s9, 2
      // Predicated region
      $region41: #{decoder_forward.7} parent=39 // pred_check
        %p224 = pneg %p106
      $region42: #{decoder_forward.7} parent=39 // pred_check_branch
        %226 = sbr.rel (%p224) target = $region44
      $region43: #{decoder_forward.7} parent=39 // pred_region
        %s227 = smul.u32 4, %s15
        %p228 = scmp.lt.s32.totalorder %s227, 15
        %s229 = scalar_select %p228, %s227, 15
        %s230 = smul.addr %s229, 4
        %s231 = scalar_lea.vmem %s3, %s230
      $region44: #{decoder_forward.7} parent=39 // pred_fallthru
        _
    $region40: #{decoder_forward.7} parent=5 // pred_fallthru
      _
  $region6: #{decoder_forward.7} parent=0 // loop_footer
    %s13 = sadd.s32 1, %s9
  $region7: #{decoder_forward.7} parent=0 // loop_footer_branch
    %8 = sbr.rel target = $region3
  $region8: #{decoder_forward.7} parent=0 // loop_exit
    _

// kernel: decoder_forward.6
$region0: #{decoder_forward.6}
  #allocation0 [shape = 'u32[]', space=smem, size = 0x4, offset = 0x4, fixed_abs, tag = 'smem constant byte address 0x4 - core index']
  #allocation1 [shape = 'u32[144,128]{1,0:T(1,128)}', space=vmem, size = 0x12000, scoped, tag = 'internal scratch']
  %s0 = inlined_call_operand.vmem [shape: f32[36,2048], index: 0, kind: input, shape index: {}]
  %s1 = inlined_call_operand.vmem [shape: f32[36,2048], index: 1, kind: input, shape index: {}]
  %s2 = inlined_call_operand.vmem [shape: f32[4,36], index: 2, kind: input, shape index: {}]
  %s3 = inlined_call_operand.vmem [shape: f32[4,36], index: 3, kind: input, shape index: {}]
  %s4 = inlined_call_operand.vmem [shape: f32[4,1], index: 4, kind: input, shape index: {}]
  %s5 = inlined_call_operand.vmem [shape: f32[4,2048], index: 5, kind: output, shape index: {0}]
  %s6 = inlined_call_operand.vmem [shape: f32[4,4,1], index: 6, kind: output, shape index: {1}]
  %s7 = inlined_call_operand.vmem [shape: f32[4,4,1], index: 7, kind: output, shape index: {2}]
  %8 = xla_tuple %s5, %s6, %s7
  %s9 = sld [smem:[#allocation0]]
  $region115: #{decoder_forward.6} parent=0
    _
  %s11 = ssub.s32 1, %s9
  %s12 = scalar_select 0, %s11, %s9
  $region1: #{decoder_forward.6} parent=0
    #allocation2 [shape = 'u8[163840]{0}', space=vmem, size = 0x28000, scoped, tag = 'input window, operand 0']
    #allocation3 [shape = 'u8[163840]{0}', space=vmem, size = 0x28000, scoped, tag = 'input window, operand 1']
    loop: start=0, step=1, limit=6
    $region2: #{decoder_forward.6} parent=1 // loop_pre_header
      _
    $region3: #{decoder_forward.6} parent=1 // loop_header
      %s14 = sphi 0, %s18
      %p15 = scmp.ge.s32.totalorder %s14, 6
      %s24 = sphi 0, %s26
      %s27 = sphi 0, %s24
      %s28 = sphi 0, %s27
      %s44 = sphi 0, %s28
      %s50 = sphi 0, %s52
      %s53 = sphi 0, %s50
      %s54 = sphi 0, %s53
      %s70 = sphi 0, %s54
      %s74 = sphi 0, %s74
      %s76 = sphi 0, %s74
      %s77 = sphi 0, %s76
      %s91 = sphi 0, %s77
      %s95 = sphi 0, %s95
      %s97 = sphi 0, %s95
      %s98 = sphi 0, %s97
      %s112 = sphi 0, %s98
      %s116 = sphi 0, %s116
      %s118 = sphi 0, %s116
      %s119 = sphi 0, %s118
      %s133 = sphi 0, %s119
      %s139 = sphi 0, %s141
      %s142 = sphi 0, %s139
      %s143 = sphi 0, %s142
      %s159 = sphi 0, %s143
      %s165 = sphi 0, %s167
      %s168 = sphi 0, %s165
      %s169 = sphi 0, %s168
      %s185 = sphi 0, %s169
      %s191 = sphi 0, %s193
      %s194 = sphi 0, %s191
      %s195 = sphi 0, %s194
      %s211 = sphi 0, %s195
    $region4: #{decoder_forward.6} parent=1 // loop_header_branch
      %17 = sbr.rel (%p15) target = $region8
    $region5: #{decoder_forward.6} parent=1 // loop_body
      %s19 = ssub.s32 %s14, 1
      %s20 = ssub.s32 %s14, 2
      %s21 = sadd.s32 %s14, 1
      %s22 = ssub.s32 %s14, %s21
      %p23 = scmp.eq.s32.totalorder %s22, 0
      %s25 = sadd.s32 %s24, 1
      %s26 = scalar_select %p23, %s24, %s25
      %p29 = pneg %p23
      %p30 = scmp.eq.s32.totalorder %s14, 3
      %p31 = por %p29, %p30
      %p32 = scmp.ne.s32.totalorder %s24, %s27
      %p33 = scmp.eq.s32.totalorder %s14, 0
      %p34 = por %p32, %p33
      %p35 = scmp.ne.s32.totalorder %s24, %s27
      %p36 = scmp.eq.s32.totalorder %s19, 3
      %p37 = por %p35, %p36
      %p38 = scmp.ne.s32.totalorder %s27, %s28
      %p39 = scmp.eq.s32.totalorder %s19, 0
      %p40 = por %p38, %p39
      %p41 = scmp.ne.s32.totalorder %s27, %s28
      %p42 = scmp.eq.s32.totalorder %s20, 3
      %p43 = por %p41, %p42
      %p45 = scmp.ne.s32.totalorder %s28, %s44
      %p46 = scmp.eq.s32.totalorder %s20, 0
      %p47 = por %p45, %p46
      %s48 = ssub.s32 %s14, %s21
      %p49 = scmp.eq.s32.totalorder %s48, 0
      %s51 = sadd.s32 %s50, 1
      %s52 = scalar_select %p49, %s50, %s51
      %p55 = pneg %p49
      %p56 = scmp.eq.s32.totalorder %s14, 3
      %p57 = por %p55, %p56
      %p58 = scmp.ne.s32.totalorder %s50, %s53
      %p59 = scmp.eq.s32.totalorder %s14, 0
      %p60 = por %p58, %p59
      %p61 = scmp.ne.s32.totalorder %s50, %s53
      %p62 = scmp.eq.s32.totalorder %s19, 3
      %p63 = por %p61, %p62
      %p64 = scmp.ne.s32.totalorder %s53, %s54
      %p65 = scmp.eq.s32.totalorder %s19, 0
      %p66 = por %p64, %p65
      %p67 = scmp.ne.s32.totalorder %s53, %s54
      %p68 = scmp.eq.s32.totalorder %s20, 3
      %p69 = por %p67, %p68
      %p71 = scmp.ne.s32.totalorder %s54, %s70
      %p72 = scmp.eq.s32.totalorder %s20, 0
      %p73 = por %p71, %p72
      %s75 = sadd.s32 %s74, 1
      %p78 = scmp.eq.s32.totalorder %s14, 3
      %p79 = scmp.ne.s32.totalorder %s74, %s76
      %p80 = scmp.eq.s32.totalorder %s14, 0
      %p81 = por %p79, %p80
      %p82 = scmp.ne.s32.totalorder %s74, %s76
      %p83 = scmp.eq.s32.totalorder %s19, 3
      %p84 = por %p82, %p83
      %p85 = scmp.ne.s32.totalorder %s76, %s77
      %p86 = scmp.eq.s32.totalorder %s19, 0
      %p87 = por %p85, %p86
      %p88 = scmp.ne.s32.totalorder %s76, %s77
      %p89 = scmp.eq.s32.totalorder %s20, 3
      %p90 = por %p88, %p89
      %p92 = scmp.ne.s32.totalorder %s77, %s91
      %p93 = scmp.eq.s32.totalorder %s20, 0
      %p94 = por %p92, %p93
      %s96 = sadd.s32 %s95, 1
      %p99 = scmp.eq.s32.totalorder %s14, 3
      %p100 = scmp.ne.s32.totalorder %s95, %s97
      %p101 = scmp.eq.s32.totalorder %s14, 0
      %p102 = por %p100, %p101
      %p103 = scmp.ne.s32.totalorder %s95, %s97
      %p104 = scmp.eq.s32.totalorder %s19, 3
      %p105 = por %p103, %p104
      %p106 = scmp.ne.s32.totalorder %s97, %s98
      %p107 = scmp.eq.s32.totalorder %s19, 0
      %p108 = por %p106, %p107
      %p109 = scmp.ne.s32.totalorder %s97, %s98
      %p110 = scmp.eq.s32.totalorder %s20, 3
      %p111 = por %p109, %p110
      %p113 = scmp.ne.s32.totalorder %s98, %s112
      %p114 = scmp.eq.s32.totalorder %s20, 0
      %p115 = por %p113, %p114
      %s117 = sadd.s32 %s116, 1
      %p120 = scmp.eq.s32.totalorder %s14, 3
      %p121 = scmp.ne.s32.totalorder %s116, %s118
      %p122 = scmp.eq.s32.totalorder %s14, 0
      %p123 = por %p121, %p122
      %p124 = scmp.ne.s32.totalorder %s116, %s118
      %p125 = scmp.eq.s32.totalorder %s19, 3
      %p126 = por %p124, %p125
      %p127 = scmp.ne.s32.totalorder %s118, %s119
      %p128 = scmp.eq.s32.totalorder %s19, 0
      %p129 = por %p127, %p128
      %p130 = scmp.ne.s32.totalorder %s118, %s119
      %p131 = scmp.eq.s32.totalorder %s20, 3
      %p132 = por %p130, %p131
      %p134 = scmp.ne.s32.totalorder %s119, %s133
      %p135 = scmp.eq.s32.totalorder %s20, 0
      %p136 = por %p134, %p135
      %s137 = ssub.s32 %s14, %s21
      %p138 = scmp.eq.s32.totalorder %s137, 0
      %s140 = sadd.s32 %s139, 1
      %s141 = scalar_select %p138, %s139, %s140
      %p144 = pneg %p138
      %p145 = scmp.eq.s32.totalorder %s14, 3
      %p146 = por %p144, %p145
      %p147 = scmp.ne.s32.totalorder %s139, %s142
      %p148 = scmp.eq.s32.totalorder %s14, 0
      %p149 = por %p147, %p148
      %p150 = scmp.ne.s32.totalorder %s139, %s142
      %p151 = scmp.eq.s32.totalorder %s19, 3
      %p152 = por %p150, %p151
      %p153 = scmp.ne.s32.totalorder %s142, %s143
      %p154 = scmp.eq.s32.totalorder %s19, 0
      %p155 = por %p153, %p154
      %p156 = scmp.ne.s32.totalorder %s142, %s143
      %p157 = scmp.eq.s32.totalorder %s20, 3
      %p158 = por %p156, %p157
      %p160 = scmp.ne.s32.totalorder %s143, %s159
      %p161 = scmp.eq.s32.totalorder %s20, 0
      %p162 = por %p160, %p161
      %s163 = ssub.s32 %s14, %s21
      %p164 = scmp.eq.s32.totalorder %s163, 0
      %s166 = sadd.s32 %s165, 1
      %s167 = scalar_select %p164, %s165, %s166
      %p170 = pneg %p164
      %p171 = scmp.eq.s32.totalorder %s14, 3
      %p172 = por %p170, %p171
      %p173 = scmp.ne.s32.totalorder %s165, %s168
      %p174 = scmp.eq.s32.totalorder %s14, 0
      %p175 = por %p173, %p174
      %p176 = scmp.ne.s32.totalorder %s165, %s168
      %p177 = scmp.eq.s32.totalorder %s19, 3
      %p178 = por %p176, %p177
      %p179 = scmp.ne.s32.totalorder %s168, %s169
      %p180 = scmp.eq.s32.totalorder %s19, 0
      %p181 = por %p179, %p180
      %p182 = scmp.ne.s32.totalorder %s168, %s169
      %p183 = scmp.eq.s32.totalorder %s20, 3
      %p184 = por %p182, %p183
      %p186 = scmp.ne.s32.totalorder %s169, %s185
      %p187 = scmp.eq.s32.totalorder %s20, 0
      %p188 = por %p186, %p187
      %s189 = ssub.s32 %s14, %s21
      %p190 = scmp.eq.s32.totalorder %s189, 0
      %s192 = sadd.s32 %s191, 1
      %s193 = scalar_select %p190, %s191, %s192
      %p196 = pneg %p190
      %p197 = scmp.eq.s32.totalorder %s14, 3
      %p198 = por %p196, %p197
      %p199 = scmp.ne.s32.totalorder %s191, %s194
      %p200 = scmp.eq.s32.totalorder %s14, 0
      %p201 = por %p199, %p200
      %p202 = scmp.ne.s32.totalorder %s191, %s194
      %p203 = scmp.eq.s32.totalorder %s19, 3
      %p204 = por %p202, %p203
      %p205 = scmp.ne.s32.totalorder %s194, %s195
      %p206 = scmp.eq.s32.totalorder %s19, 0
      %p207 = por %p205, %p206
      %p208 = scmp.ne.s32.totalorder %s194, %s195
      %p209 = scmp.eq.s32.totalorder %s20, 3
      %p210 = por %p208, %p209
      %p212 = scmp.ne.s32.totalorder %s195, %s211
      %p213 = scmp.eq.s32.totalorder %s20, 0
      %p214 = por %p212, %p213
      %p215 = scmp.le.s32.totalorder 1, %s14
      %p216 = scmp.lt.s32.totalorder %s14, 5
      %p217 = pnand %p215, %p216
      %p218 = pneg %p217
      // Predicated region
      $region9: #{decoder_forward.6} parent=5 // pred_check
        _
      $region10: #{decoder_forward.6} parent=5 // pred_check_branch
        %220 = sbr.rel (%p217) target = $region12
      $region11: #{decoder_forward.6} parent=5 // pred_region
        %s221 = ssub.s32 %s14, 1
        // Predicated region
        $region13: #{decoder_forward.6} parent=11 // pred_check
          %p222 = pneg %p87
        $region14: #{decoder_forward.6} parent=11 // pred_check_branch
          %224 = sbr.rel (%p222) target = $region16
        $region15: #{decoder_forward.6} parent=11 // pred_region
          _
        $region16: #{decoder_forward.6} parent=11 // pred_fallthru
          _
        // Predicated region
        $region17: #{decoder_forward.6} parent=11 // pred_check
          %p225 = pneg %p108
        $region18: #{decoder_forward.6} parent=11 // pred_check_branch
          %227 = sbr.rel (%p225) target = $region20
        $region19: #{decoder_forward.6} parent=11 // pred_region
          _
        $region20: #{decoder_forward.6} parent=11 // pred_fallthru
          _
        // Predicated region
        $region21: #{decoder_forward.6} parent=11 // pred_check
          %p228 = pneg %p129
        $region22: #{decoder_forward.6} parent=11 // pred_check_branch
          %230 = sbr.rel (%p228) target = $region24
        $region23: #{decoder_forward.6} parent=11 // pred_region
          _
        $region24: #{decoder_forward.6} parent=11 // pred_fallthru
          _
      $region12: #{decoder_forward.6} parent=5 // pred_fallthru
        _
      %p231 = scmp.lt.s32.totalorder %s14, 4
      // Predicated region
      $region25: #{decoder_forward.6} parent=5 // pred_check
        %p232 = pneg %p231
      $region26: #{decoder_forward.6} parent=5 // pred_check_branch
        %234 = sbr.rel (%p232) target = $region28
      $region27: #{decoder_forward.6} parent=5 // pred_region
        // Predicated region
        $region29: #{decoder_forward.6} parent=27 // pred_check
          %p235 = pneg %p34
        $region30: #{decoder_forward.6} parent=27 // pred_check_branch
          %237 = sbr.rel (%p235) target = $region32
        $region31: #{decoder_forward.6} parent=27 // pred_region
          %s238 = sand.u32 %s24, 1
          %s239 = sand.u32 %s24, 1
          %s240 = smul.addr %s239, 160
          %s241 = scalar_lea.vmem [#allocation2], %s240
          %s242 = smul.u32 4, %s14
          %s243 = smul.addr %s242, 8
          %s244 = scalar_lea.vmem %s0, %s243
          // Predicated region
          $region33: #{decoder_forward.6} parent=31 // pred_check
            _
          $region34: #{decoder_forward.6} parent=31 // pred_check_branch
            %246 = sbr.rel (0) target = $region36
          $region35: #{decoder_forward.6} parent=31 // pred_region
            // Predicated region
            $region37: #{decoder_forward.6} parent=35 // pred_check
              _
            $region38: #{decoder_forward.6} parent=35 // pred_check_branch
              %248 = sbr.rel (0) target = $region40
            $region39: #{decoder_forward.6} parent=35 // pred_region
              loop: start=0, step=1, limit=1
              $region41: #{decoder_forward.6} parent=39 // loop_pre_header
                _
              $region42: #{decoder_forward.6} parent=39 // loop_header
                %s250 = sphi 0, %s254
                %p251 = scmp.ge.s32.totalorder %s250, 1
                %s255 = sphi %s244, %s244
                %s256 = sphi %s241, %s241
              $region43: #{decoder_forward.6} parent=39 // loop_header_branch
                %253 = sbr.rel (%p251) target = $region47
              $region44: #{decoder_forward.6} parent=39 // loop_body
                %v257 = vld [vmem:[%s255] sm:$0xff]
                %258 = vst [vmem:[%s256] sm:$0xff] %v257
                %v259 = vld [vmem:[%s255 + $0x8] sm:$0xff]
                %260 = vst [vmem:[%s256 + $0x8] sm:$0xff] %v259
                %v261 = vld [vmem:[%s255 + $0x10] sm:$0xff]
                %262 = vst [vmem:[%s256 + $0x10] sm:$0xff] %v261
                %v263 = vld [vmem:[%s255 + $0x18] sm:$0xff]
                %264 = vst [vmem:[%s256 + $0x18] sm:$0xff] %v263
                %v265 = vld [vmem:[%s255 + $0x80] sm:$0xff]
                %266 = vst [vmem:[%s256 + $0x20] sm:$0xff] %v265
                %v267 = vld [vmem:[%s255 + $0x88] sm:$0xff]
                %268 = vst [vmem:[%s256 + $0x28] sm:$0xff] %v267
                %v269 = vld [vmem:[%s255 + $0x90] sm:$0xff]
                %270 = vst [vmem:[%s256 + $0x30] sm:$0xff] %v269
                %v271 = vld [vmem:[%s255 + $0x98] sm:$0xff]
                %272 = vst [vmem:[%s256 + $0x38] sm:$0xff] %v271
                %v273 = vld [vmem:[%s255 + $0x100] sm:$0xff]
                %274 = vst [vmem:[%s256 + $0x40] sm:$0xff] %v273
                %v275 = vld [vmem:[%s255 + $0x108] sm:$0xff]
                %276 = vst [vmem:[%s256 + $0x48] sm:$0xff] %v275
                %v277 = vld [vmem:[%s255 + $0x110] sm:$0xff]
                %278 = vst [vmem:[%s256 + $0x50] sm:$0xff] %v277
                %v279 = vld [vmem:[%s255 + $0x118] sm:$0xff]
                %280 = vst [vmem:[%s256 + $0x58] sm:$0xff] %v279
                %v281 = vld [vmem:[%s255 + $0x180] sm:$0xff]
                %282 = vst [vmem:[%s256 + $0x60] sm:$0xff] %v281
                %v283 = vld [vmem:[%s255 + $0x188] sm:$0xff]
                %284 = vst [vmem:[%s256 + $0x68] sm:$0xff] %v283
                %v285 = vld [vmem:[%s255 + $0x190] sm:$0xff]
                %286 = vst [vmem:[%s256 + $0x70] sm:$0xff] %v285
                %v287 = vld [vmem:[%s255 + $0x198] sm:$0xff]
                %288 = vst [vmem:[%s256 + $0x78] sm:$0xff] %v287
                %v289 = vld [vmem:[%s255 + $0x200] sm:$0xff]
                %290 = vst [vmem:[%s256 + $0x80] sm:$0xff] %v289
                %v291 = vld [vmem:[%s255 + $0x208] sm:$0xff]
                %292 = vst [vmem:[%s256 + $0x88] sm:$0xff] %v291
                %v293 = vld [vmem:[%s255 + $0x210] sm:$0xff]
                %294 = vst [vmem:[%s256 + $0x90] sm:$0xff] %v293
                %v295 = vld [vmem:[%s255 + $0x218] sm:$0xff]
                %296 = vst [vmem:[%s256 + $0x98] sm:$0xff] %v295
              $region45: #{decoder_forward.6} parent=39 // loop_footer
                %s254 = sadd.s32 1, %s250
              $region46: #{decoder_forward.6} parent=39 // loop_footer_branch
                %249 = sbr.rel target = $region42
              $region47: #{decoder_forward.6} parent=39 // loop_exit
                _
            $region40: #{decoder_forward.6} parent=35 // pred_fallthru
              _
            // Predicated region
            $region48: #{decoder_forward.6} parent=35 // pred_check
              _
            $region49: #{decoder_forward.6} parent=35 // pred_check_branch
              %298 = sbr.rel target = $region51
            $region50: #{decoder_forward.6} parent=35 // pred_region
              _
            $region51: #{decoder_forward.6} parent=35 // pred_fallthru
              _
          $region36: #{decoder_forward.6} parent=31 // pred_fallthru
            _
          %299 = vnop
        $region32: #{decoder_forward.6} parent=27 // pred_fallthru
          _
        // Predicated region
        $region52: #{decoder_forward.6} parent=27 // pred_check
          %p300 = pneg %p60
        $region53: #{decoder_forward.6} parent=27 // pred_check_branch
          %302 = sbr.rel (%p300) target = $region55
        $region54: #{decoder_forward.6} parent=27 // pred_region
          %s303 = sand.u32 %s50, 1
          %s304 = sand.u32 %s50, 1
          %s305 = smul.addr %s304, 160
          %s306 = scalar_lea.vmem [#allocation3], %s305
          %s307 = smul.u32 4, %s14
          %s308 = smul.addr %s307, 8
          %s309 = scalar_lea.vmem %s1, %s308
          // Predicated region
          $region56: #{decoder_forward.6} parent=54 // pred_check
            _
          $region57: #{decoder_forward.6} parent=54 // pred_check_branch
            %311 = sbr.rel (0) target = $region59
          $region58: #{decoder_forward.6} parent=54 // pred_region
            // Predicated region
            $region60: #{decoder_forward.6} parent=58 // pred_check
              _
            $region61: #{decoder_forward.6} parent=58 // pred_check_branch
              %313 = sbr.rel (0) target = $region63
            $region62: #{decoder_forward.6} parent=58 // pred_region
              loop: start=0, step=1, limit=1
              $region64: #{decoder_forward.6} parent=62 // loop_pre_header
                _
              $region65: #{decoder_forward.6} parent=62 // loop_header
                %s315 = sphi 0, %s319
                %p316 = scmp.ge.s32.totalorder %s315, 1
                %s320 = sphi %s309, %s309
                %s321 = sphi %s306, %s306
              $region66: #{decoder_forward.6} parent=62 // loop_header_branch
                %318 = sbr.rel (%p316) target = $region70
              $region67: #{decoder_forward.6} parent=62 // loop_body
                %v322 = vld [vmem:[%s320] sm:$0xff]
                %323 = vst [vmem:[%s321] sm:$0xff] %v322
                %v324 = vld [vmem:[%s320 + $0x8] sm:$0xff]
                %325 = vst [vmem:[%s321 + $0x8] sm:$0xff] %v324
                %v326 = vld [vmem:[%s320 + $0x10] sm:$0xff]
                %327 = vst [vmem:[%s321 + $0x10] sm:$0xff] %v326
                %v328 = vld [vmem:[%s320 + $0x18] sm:$0xff]
                %329 = vst [vmem:[%s321 + $0x18] sm:$0xff] %v328
                %v330 = vld [vmem:[%s320 + $0x80] sm:$0xff]
                %331 = vst [vmem:[%s321 + $0x20] sm:$0xff] %v330
                %v332 = vld [vmem:[%s320 + $0x88] sm:$0xff]
                %333 = vst [vmem:[%s321 + $0x28] sm:$0xff] %v332
                %v334 = vld [vmem:[%s320 + $0x90] sm:$0xff]
                %335 = vst [vmem:[%s321 + $0x30] sm:$0xff] %v334
                %v336 = vld [vmem:[%s320 + $0x98] sm:$0xff]
                %337 = vst [vmem:[%s321 + $0x38] sm:$0xff] %v336
                %v338 = vld [vmem:[%s320 + $0x100] sm:$0xff]
                %339 = vst [vmem:[%s321 + $0x40] sm:$0xff] %v338
                %v340 = vld [vmem:[%s320 + $0x108] sm:$0xff]
                %341 = vst [vmem:[%s321 + $0x48] sm:$0xff] %v340
                %v342 = vld [vmem:[%s320 + $0x110] sm:$0xff]
                %343 = vst [vmem:[%s321 + $0x50] sm:$0xff] %v342
                %v344 = vld [vmem:[%s320 + $0x118] sm:$0xff]
                %345 = vst [vmem:[%s321 + $0x58] sm:$0xff] %v344
                %v346 = vld [vmem:[%s320 + $0x180] sm:$0xff]
                %347 = vst [vmem:[%s321 + $0x60] sm:$0xff] %v346
                %v348 = vld [vmem:[%s320 + $0x188] sm:$0xff]
                %349 = vst [vmem:[%s321 + $0x68] sm:$0xff] %v348
                %v350 = vld [vmem:[%s320 + $0x190] sm:$0xff]
                %351 = vst [vmem:[%s321 + $0x70] sm:$0xff] %v350
                %v352 = vld [vmem:[%s320 + $0x198] sm:$0xff]
                %353 = vst [vmem:[%s321 + $0x78] sm:$0xff] %v352
                %v354 = vld [vmem:[%s320 + $0x200] sm:$0xff]
                %355 = vst [vmem:[%s321 + $0x80] sm:$0xff] %v354
                %v356 = vld [vmem:[%s320 + $0x208] sm:$0xff]
                %357 = vst [vmem:[%s321 + $0x88] sm:$0xff] %v356
                %v358 = vld [vmem:[%s320 + $0x210] sm:$0xff]
                %359 = vst [vmem:[%s321 + $0x90] sm:$0xff] %v358
                %v360 = vld [vmem:[%s320 + $0x218] sm:$0xff]
                %361 = vst [vmem:[%s321 + $0x98] sm:$0xff] %v360
              $region68: #{decoder_forward.6} parent=62 // loop_footer
                %s319 = sadd.s32 1, %s315
              $region69: #{decoder_forward.6} parent=62 // loop_footer_branch
                %314 = sbr.rel target = $region65
              $region70: #{decoder_forward.6} parent=62 // loop_exit
                _
            $region63: #{decoder_forward.6} parent=58 // pred_fallthru
              _
            // Predicated region
            $region71: #{decoder_forward.6} parent=58 // pred_check
              _
            $region72: #{decoder_forward.6} parent=58 // pred_check_branch
              %363 = sbr.rel target = $region74
            $region73: #{decoder_forward.6} parent=58 // pred_region
              _
            $region74: #{decoder_forward.6} parent=58 // pred_fallthru
              _
          $region59: #{decoder_forward.6} parent=54 // pred_fallthru
            _
          %364 = vnop
        $region55: #{decoder_forward.6} parent=27 // pred_fallthru
          _
      $region28: #{decoder_forward.6} parent=5 // pred_fallthru
        _
      %p365 = scmp.le.s32.totalorder 1, %s14
      %p366 = scmp.lt.s32.totalorder %s14, 5
      %p367 = pnand %p365, %p366
      %p368 = pneg %p367
      // Predicated region
      $region75: #{decoder_forward.6} parent=5 // pred_check
        _
      $region76: #{decoder_forward.6} parent=5 // pred_check_branch
        %370 = sbr.rel (%p367) target = $region78
      $region77: #{decoder_forward.6} parent=5 // pred_region
        %s371 = ssub.s32 %s14, 1
        %s372 = sand.u32 %s27, 1
        %s373 = sand.u32 %s27, 1
        %s374 = smul.addr %s373, 160
        %s375 = scalar_lea.vmem [#allocation2], %s374
        // Predicated region
        $region79: #{decoder_forward.6} parent=77 // pred_check
          %p376 = pneg %p40
        $region80: #{decoder_forward.6} parent=77 // pred_check_branch
          %378 = sbr.rel (%p376) target = $region82
        $region81: #{decoder_forward.6} parent=77 // pred_region
          _
        $region82: #{decoder_forward.6} parent=77 // pred_fallthru
          _
        %s379 = sand.u32 %s53, 1
        %s380 = sand.u32 %s53, 1
        %s381 = smul.addr %s380, 160
        %s382 = scalar_lea.vmem [#allocation3], %s381
        // Predicated region
        $region83: #{decoder_forward.6} parent=77 // pred_check
          %p383 = pneg %p66
        $region84: #{decoder_forward.6} parent=77 // pred_check_branch
          %385 = sbr.rel (%p383) target = $region86
        $region85: #{decoder_forward.6} parent=77 // pred_region
          _
        $region86: #{decoder_forward.6} parent=77 // pred_fallthru
          _
        %s386 = sand.u32 %s27, 1
        %s387 = sand.u32 %s27, 1
        %s388 = smul.addr %s387, 160
        %s389 = scalar_lea.vmem [#allocation2], %s388
        %p390 = pneg %p40
        %p391 = pneg %p37
        %s392 = sand.u32 %s53, 1
        %s393 = sand.u32 %s53, 1
        %s394 = smul.addr %s393, 160
        %s395 = scalar_lea.vmem [#allocation3], %s394
        %p396 = pneg %p66
        %p397 = pneg %p63
        %p398 = pneg %p87
        %p399 = pneg %p84
        %p400 = pneg %p108
        %p401 = pneg %p105
        %p402 = pneg %p129
        %p403 = pneg %p126
        %p404 = pneg %p155
        %p405 = pneg %p152
        %s406 = smul.u32 4, %s19
        %p407 = scmp.lt.s32.totalorder %s406, 15
        %s408 = scalar_select %p407, %s406, 15
        %s409 = smul.addr %s408, 4
        %s410 = scalar_lea.vmem %s5, %s409
        %p411 = pneg %p181
        %p412 = pneg %p178
        %p413 = scmp.lt.s32.totalorder %s19, 3
        %s414 = scalar_select %p413, %s19, 3
        %s415 = smul.addr %s414, 4
        %s416 = scalar_lea.vmem %s6, %s415
        %p417 = pneg %p207
        %p418 = pneg %p204
        %p419 = scmp.lt.s32.totalorder %s19, 3
        %s420 = scalar_select %p419, %s19, 3
        %s421 = smul.addr %s420, 4
        %s422 = scalar_lea.vmem %s7, %s421
        %s423 = smul.u32 4, %s19
        %s424 = smul.u32 4, %s19
        %s425 = smul.u32 4, %s19
        %p426 = scmp.lt.s32.totalorder %s425, 15
        %s427 = scalar_select %p426, %s425, 15
        %s428 = smul.addr %s427, 4
        %s429 = scalar_lea.vmem %s5, %s428
        %s430 = smul.u32 4, %s19
        %p431 = scmp.lt.s32.totalorder %s19, 3
        %s432 = scalar_select %p431, %s19, 3
        %s433 = smul.addr %s432, 4
        %s434 = scalar_lea.vmem %s6, %s433
        %p435 = scmp.lt.s32.totalorder %s19, 3
        %s436 = scalar_select %p435, %s19, 3
        %s437 = smul.addr %s436, 4
        %s438 = scalar_lea.vmem %s7, %s437
        %v439 = vld [vmem:[%s2] sm:$0xf]
        %v440 = vld [vmem:[%s375] sm:$0xff]
        %v441 = vld [vmem:[%s375 + $0x8] sm:$0xff]
        %v442 = vld [vmem:[%s375 + $0x10] sm:$0xff]
        %v443 = vld [vmem:[%s375 + $0x18] sm:$0xff]
        %v444 = vld [vmem:[%s375 + $0x20] sm:$0xff]
        %v445 = vld [vmem:[%s375 + $0x28] sm:$0xff]
        %v446 = vld [vmem:[%s375 + $0x30] sm:$0xff]
        %v447 = vld [vmem:[%s375 + $0x38] sm:$0xff]
        %v448 = vld [vmem:[%s375 + $0x40] sm:$0xff]
        %v449 = vld [vmem:[%s375 + $0x48] sm:$0xff]
        %v450 = vld [vmem:[%s375 + $0x50] sm:$0xff]
        %v451 = vld [vmem:[%s375 + $0x58] sm:$0xff]
        %v452 = vld [vmem:[%s375 + $0x60] sm:$0xff]
        %v453 = vld [vmem:[%s375 + $0x68] sm:$0xff]
        %v454 = vld [vmem:[%s375 + $0x70] sm:$0xff]
        %v455 = vld [vmem:[%s375 + $0x78] sm:$0xff]
        %v456 = vld [vmem:[%s375 + $0x80] sm:$0xf]
        %v457 = vld [vmem:[%s375 + $0x88] sm:$0xf]
        %v458 = vld [vmem:[%s375 + $0x90] sm:$0xf]
        %v459 = vld [vmem:[%s375 + $0x98] sm:$0xf]
        %v460 = vld [vmem:[%s3] sm:$0xf]
        %v461 = vld [vmem:[%s382] sm:$0xff]
        %v462 = vld [vmem:[%s382 + $0x8] sm:$0xff]
        %v463 = vld [vmem:[%s382 + $0x10] sm:$0xff]
        %v464 = vld [vmem:[%s382 + $0x18] sm:$0xff]
        %v465 = vld [vmem:[%s382 + $0x20] sm:$0xff]
        %v466 = vld [vmem:[%s382 + $0x28] sm:$0xff]
        %v467 = vld [vmem:[%s382 + $0x30] sm:$0xff]
        %v468 = vld [vmem:[%s382 + $0x38] sm:$0xff]
        %v469 = vld [vmem:[%s382 + $0x40] sm:$0xff]
        %v470 = vld [vmem:[%s382 + $0x48] sm:$0xff]
        %v471 = vld [vmem:[%s382 + $0x50] sm:$0xff]
        %v472 = vld [vmem:[%s382 + $0x58] sm:$0xff]
        %v473 = vld [vmem:[%s382 + $0x60] sm:$0xff]
        %v474 = vld [vmem:[%s382 + $0x68] sm:$0xff]
        %v475 = vld [vmem:[%s382 + $0x70] sm:$0xff]
        %v476 = vld [vmem:[%s382 + $0x78] sm:$0xff]
        %v477 = vld [vmem:[%s382 + $0x80] sm:$0xf]
        %v478 = vld [vmem:[%s382 + $0x88] sm:$0xf]
        %v479 = vld [vmem:[%s382 + $0x90] sm:$0xf]
        %v480 = vld [vmem:[%s382 + $0x98] sm:$0xf]
        %vm481 = vcmask 293888
        %v483 = vsel %vm481, %v460, 0
        %vm485 = vcmask 1043456
        %v487 = vsel %vm485, %v477, 0
        %v490 = vsel %vm485, %v478, 0
        %v493 = vsel %vm485, %v479, 0
        %v496 = vsel %vm485, %v480, 0
        %498 = vmatprep.subr.mxu0 0.0
        %499 = vmatpush1.msra.mxu0 0.0
        %500 = vmatprep.subr.mxu0 0.0
        %501 = vmatpush1.msra.mxu0 0.0
        %502 = vmatprep.subr.mxu0 0.0
        %503 = vmatpush1.msra.mxu0 0.0
        %504 = vmatprep.subr.mxu0 0.0
        %505 = vmatpush1.msra.mxu0 0.0
        %506 = vmatprep.subr.mxu0 0.0
        %507 = vmatpush1.msra.mxu0 0.0
        %508 = vmatprep.subr.mxu0 0.0
        %509 = vmatpush1.msra.mxu0 0.0
        %510 = vmatprep.subr.mxu0 0.0
        %511 = vmatpush1.msra.mxu0 0.0
        %512 = vmatprep.subr.mxu0 0.0
        %513 = vmatpush1.msra.mxu0 0.0
        %514 = vmatprep.subr.mxu0 0.0
        %515 = vmatpush1.msra.mxu0 0.0
        %516 = vmatprep.subr.mxu0 0.0
        %517 = vmatpush1.msra.mxu0 0.0
        %518 = vmatprep.subr.mxu0 0.0
        %519 = vmatpush1.msra.mxu0 0.0
        %520 = vmatprep.subr.mxu0 %v490
        %521 = vmatpush1.msra.mxu0 %v487
        %522 = vmatprep.subr.mxu0 %v474
        %523 = vmatpush1.msra.mxu0 %v473
        %524 = vmatprep.subr.mxu0 %v470
        %525 = vmatpush1.msra.mxu0 %v469
        %526 = vmatprep.subr.mxu0 %v466
        %527 = vmatpush1.msra.mxu0 %v465
        %528 = vmatprep.subr.mxu0 %v462
        %529 = vmatpush1.msra.mxu0 %v461
        %530 = vmatprep.subr.mxu0 0.0
        %531 = vmatpush2.msra.mxu0 0.0
        %532 = vmatprep.subr.mxu0 0.0
        %533 = vmatpush2.msra.mxu0 0.0
        %534 = vmatprep.subr.mxu0 0.0
        %535 = vmatpush2.msra.mxu0 0.0
        %536 = vmatprep.subr.mxu0 0.0
        %537 = vmatpush2.msra.mxu0 0.0
        %538 = vmatprep.subr.mxu0 0.0
        %539 = vmatpush2.msra.mxu0 0.0
        %540 = vmatprep.subr.mxu0 0.0
        %541 = vmatpush2.msra.mxu0 0.0
        %542 = vmatprep.subr.mxu0 0.0
        %543 = vmatpush2.msra.mxu0 0.0
        %544 = vmatprep.subr.mxu0 0.0
        %545 = vmatpush2.msra.mxu0 0.0
        %546 = vmatprep.subr.mxu0 0.0
        %547 = vmatpush2.msra.mxu0 0.0
        %548 = vmatprep.subr.mxu0 0.0
        %549 = vmatpush2.msra.mxu0 0.0
        %550 = vmatprep.subr.mxu0 0.0
        %551 = vmatpush2.msra.mxu0 0.0
        %552 = vmatprep.subr.mxu0 0.0
        %553 = vmatpush2.msra.mxu0 0.0
        %554 = vmatprep.subr.mxu0 0.0
        %555 = vmatpush2.msra.mxu0 0.0
        %556 = vmatprep.subr.mxu0 0.0
        %557 = vmatpush2.msra.mxu0 0.0
        %558 = vmatprep.subr.mxu0 0.0
        %559 = vmatpush2.msra.mxu0 0.0
        %560 = vmatprep.subr.mxu0 0.0
        %561 = vmatpush2.msra.mxu0 0.0
        %562 = vmatprep.mubr.f32.mxu0 0.0
        %563 = vmatmul.mubr.f32.gmra.mxu0 %v483
        %v564 = vpop.f32.mrf.mxu0
        %v565 = vadd.f32 0.0, %v564
        %v566 = vpop.f32.mrf.mxu0
        %v567 = vadd.f32 0.0, %v566
        %568 = vdwg.mxu0
        %569 = vmatprep.subr.mxu0 0.0
        %570 = vmatpush1.msra.mxu0 0.0
        %571 = vmatprep.subr.mxu0 0.0
        %572 = vmatpush1.msra.mxu0 0.0
        %573 = vmatprep.subr.mxu0 0.0
        %574 = vmatpush1.msra.mxu0 0.0
        %575 = vmatprep.subr.mxu0 0.0
        %576 = vmatpush1.msra.mxu0 0.0
        %577 = vmatprep.subr.mxu0 0.0
        %578 = vmatpush1.msra.mxu0 0.0
        %579 = vmatprep.subr.mxu0 0.0
        %580 = vmatpush1.msra.mxu0 0.0
        %581 = vmatprep.subr.mxu0 0.0
        %582 = vmatpush1.msra.mxu0 0.0
        %583 = vmatprep.subr.mxu0 0.0
        %584 = vmatpush1.msra.mxu0 0.0
        %585 = vmatprep.subr.mxu0 0.0
        %586 = vmatpush1.msra.mxu0 0.0
        %587 = vmatprep.subr.mxu0 0.0
        %588 = vmatpush1.msra.mxu0 0.0
        %589 = vmatprep.subr.mxu0 0.0
        %590 = vmatpush1.msra.mxu0 0.0
        %591 = vmatprep.subr.mxu0 %v496
        %592 = vmatpush1.msra.mxu0 %v493
        %593 = vmatprep.subr.mxu0 %v476
        %594 = vmatpush1.msra.mxu0 %v475
        %595 = vmatprep.subr.mxu0 %v472
        %596 = vmatpush1.msra.mxu0 %v471
        %597 = vmatprep.subr.mxu0 %v468
        %598 = vmatpush1.msra.mxu0 %v467
        %599 = vmatprep.subr.mxu0 %v464
        %600 = vmatpush1.msra.mxu0 %v463
        %601 = vmatprep.subr.mxu0 0.0
        %602 = vmatpush2.msra.mxu0 0.0
        %603 = vmatprep.subr.mxu0 0.0
        %604 = vmatpush2.msra.mxu0 0.0
        %605 = vmatprep.subr.mxu0 0.0
        %606 = vmatpush2.msra.mxu0 0.0
        %607 = vmatprep.subr.mxu0 0.0
        %608 = vmatpush2.msra.mxu0 0.0
        %609 = vmatprep.subr.mxu0 0.0
        %610 = vmatpush2.msra.mxu0 0.0
        %611 = vmatprep.subr.mxu0 0.0
        %612 = vmatpush2.msra.mxu0 0.0
        %613 = vmatprep.subr.mxu0 0.0
        %614 = vmatpush2.msra.mxu0 0.0
        %615 = vmatprep.subr.mxu0 0.0
        %616 = vmatpush2.msra.mxu0 0.0
        %617 = vmatprep.subr.mxu0 0.0
        %618 = vmatpush2.msra.mxu0 0.0
        %619 = vmatprep.subr.mxu0 0.0
        %620 = vmatpush2.msra.mxu0 0.0
        %621 = vmatprep.subr.mxu0 0.0
        %622 = vmatpush2.msra.mxu0 0.0
        %623 = vmatprep.subr.mxu0 0.0
        %624 = vmatpush2.msra.mxu0 0.0
        %625 = vmatprep.subr.mxu0 0.0
        %626 = vmatpush2.msra.mxu0 0.0
        %627 = vmatprep.subr.mxu0 0.0
        %628 = vmatpush2.msra.mxu0 0.0
        %629 = vmatprep.subr.mxu0 0.0
        %630 = vmatpush2.msra.mxu0 0.0
        %631 = vmatprep.subr.mxu0 0.0
        %632 = vmatpush2.msra.mxu0 0.0
        %633 = vmatprep.mubr.f32.mxu0 0.0
        %634 = vmatmul.mubr.f32.gmra.mxu0 %v483
        %v635 = vpop.f32.mrf.mxu0
        %v636 = vadd.f32 0.0, %v635
        %v637 = vpop.f32.mrf.mxu0
        %v638 = vadd.f32 0.0, %v637
        %639 = vdwg.mxu0
        %v641 = vsel %vm481, %v439, 0
        %v644 = vsel %vm485, %v456, 0
        %v647 = vsel %vm485, %v457, 0
        %v650 = vsel %vm485, %v458, 0
        %v653 = vsel %vm485, %v459, 0
        %655 = vmatprep.subr.mxu0 0.0
        %656 = vmatpush1.msra.mxu0 0.0
        %657 = vmatprep.subr.mxu0 0.0
        %658 = vmatpush1.msra.mxu0 0.0
        %659 = vmatprep.subr.mxu0 0.0
        %660 = vmatpush1.msra.mxu0 0.0
        %661 = vmatprep.subr.mxu0 0.0
        %662 = vmatpush1.msra.mxu0 0.0
        %663 = vmatprep.subr.mxu0 0.0
        %664 = vmatpush1.msra.mxu0 0.0
        %665 = vmatprep.subr.mxu0 0.0
        %666 = vmatpush1.msra.mxu0 0.0
        %667 = vmatprep.subr.mxu0 0.0
        %668 = vmatpush1.msra.mxu0 0.0
        %669 = vmatprep.subr.mxu0 0.0
        %670 = vmatpush1.msra.mxu0 0.0
        %671 = vmatprep.subr.mxu0 0.0
        %672 = vmatpush1.msra.mxu0 0.0
        %673 = vmatprep.subr.mxu0 0.0
        %674 = vmatpush1.msra.mxu0 0.0
        %675 = vmatprep.subr.mxu0 0.0
        %676 = vmatpush1.msra.mxu0 0.0
        %677 = vmatprep.subr.mxu0 %v647
        %678 = vmatpush1.msra.mxu0 %v644
        %679 = vmatprep.subr.mxu0 %v453
        %680 = vmatpush1.msra.mxu0 %v452
        %681 = vmatprep.subr.mxu0 %v449
        %682 = vmatpush1.msra.mxu0 %v448
        %683 = vmatprep.subr.mxu0 %v445
        %684 = vmatpush1.msra.mxu0 %v444
        %685 = vmatprep.subr.mxu0 %v441
        %686 = vmatpush1.msra.mxu0 %v440
        %687 = vmatprep.subr.mxu0 0.0
        %688 = vmatpush2.msra.mxu0 0.0
        %689 = vmatprep.subr.mxu0 0.0
        %690 = vmatpush2.msra.mxu0 0.0
        %691 = vmatprep.subr.mxu0 0.0
        %692 = vmatpush2.msra.mxu0 0.0
        %693 = vmatprep.subr.mxu0 0.0
        %694 = vmatpush2.msra.mxu0 0.0
        %695 = vmatprep.subr.mxu0 0.0
        %696 = vmatpush2.msra.mxu0 0.0
        %697 = vmatprep.subr.mxu0 0.0
        %698 = vmatpush2.msra.mxu0 0.0
        %699 = vmatprep.subr.mxu0 0.0
        %700 = vmatpush2.msra.mxu0 0.0
        %701 = vmatprep.subr.mxu0 0.0
        %702 = vmatpush2.msra.mxu0 0.0
        %703 = vmatprep.subr.mxu0 0.0
        %704 = vmatpush2.msra.mxu0 0.0
        %705 = vmatprep.subr.mxu0 0.0
        %706 = vmatpush2.msra.mxu0 0.0
        %707 = vmatprep.subr.mxu0 0.0
        %708 = vmatpush2.msra.mxu0 0.0
        %709 = vmatprep.subr.mxu0 0.0
        %710 = vmatpush2.msra.mxu0 0.0
        %711 = vmatprep.subr.mxu0 0.0
        %712 = vmatpush2.msra.mxu0 0.0
        %713 = vmatprep.subr.mxu0 0.0
        %714 = vmatpush2.msra.mxu0 0.0
        %715 = vmatprep.subr.mxu0 0.0
        %716 = vmatpush2.msra.mxu0 0.0
        %717 = vmatprep.subr.mxu0 0.0
        %718 = vmatpush2.msra.mxu0 0.0
        %719 = vmatprep.mubr.f32.mxu0 0.0
        %720 = vmatmul.mubr.f32.gmra.mxu0 %v641
        %v721 = vpop.f32.mrf.mxu0
        %v722 = vadd.f32 %v565, %v721
        %v723 = vpop.f32.mrf.mxu0
        %v724 = vadd.f32 %v567, %v723
        %725 = vdwg.mxu0
        %726 = vmatprep.subr.mxu0 0.0
        %727 = vmatpush1.msra.mxu0 0.0
        %728 = vmatprep.subr.mxu0 0.0
        %729 = vmatpush1.msra.mxu0 0.0
        %730 = vmatprep.subr.mxu0 0.0
        %731 = vmatpush1.msra.mxu0 0.0
        %732 = vmatprep.subr.mxu0 0.0
        %733 = vmatpush1.msra.mxu0 0.0
        %734 = vmatprep.subr.mxu0 0.0
        %735 = vmatpush1.msra.mxu0 0.0
        %736 = vmatprep.subr.mxu0 0.0
        %737 = vmatpush1.msra.mxu0 0.0
        %738 = vmatprep.subr.mxu0 0.0
        %739 = vmatpush1.msra.mxu0 0.0
        %740 = vmatprep.subr.mxu0 0.0
        %741 = vmatpush1.msra.mxu0 0.0
        %742 = vmatprep.subr.mxu0 0.0
        %743 = vmatpush1.msra.mxu0 0.0
        %744 = vmatprep.subr.mxu0 0.0
        %745 = vmatpush1.msra.mxu0 0.0
        %746 = vmatprep.subr.mxu0 0.0
        %747 = vmatpush1.msra.mxu0 0.0
        %748 = vmatprep.subr.mxu0 %v653
        %749 = vmatpush1.msra.mxu0 %v650
        %750 = vmatprep.subr.mxu0 %v455
        %751 = vmatpush1.msra.mxu0 %v454
        %752 = vmatprep.subr.mxu0 %v451
        %753 = vmatpush1.msra.mxu0 %v450
        %754 = vmatprep.subr.mxu0 %v447
        %755 = vmatpush1.msra.mxu0 %v446
        %756 = vmatprep.subr.mxu0 %v443
        %757 = vmatpush1.msra.mxu0 %v442
        %758 = vmatprep.subr.mxu0 0.0
        %759 = vmatpush2.msra.mxu0 0.0
        %760 = vmatprep.subr.mxu0 0.0
        %761 = vmatpush2.msra.mxu0 0.0
        %762 = vmatprep.subr.mxu0 0.0
        %763 = vmatpush2.msra.mxu0 0.0
        %764 = vmatprep.subr.mxu0 0.0
        %765 = vmatpush2.msra.mxu0 0.0
        %766 = vmatprep.subr.mxu0 0.0
        %767 = vmatpush2.msra.mxu0 0.0
        %768 = vmatprep.subr.mxu0 0.0
        %769 = vmatpush2.msra.mxu0 0.0
        %770 = vmatprep.subr.mxu0 0.0
        %771 = vmatpush2.msra.mxu0 0.0
        %772 = vmatprep.subr.mxu0 0.0
        %773 = vmatpush2.msra.mxu0 0.0
        %774 = vmatprep.subr.mxu0 0.0
        %775 = vmatpush2.msra.mxu0 0.0
        %776 = vmatprep.subr.mxu0 0.0
        %777 = vmatpush2.msra.mxu0 0.0
        %778 = vmatprep.subr.mxu0 0.0
        %779 = vmatpush2.msra.mxu0 0.0
        %780 = vmatprep.subr.mxu0 0.0
        %781 = vmatpush2.msra.mxu0 0.0
        %782 = vmatprep.subr.mxu0 0.0
        %783 = vmatpush2.msra.mxu0 0.0
        %784 = vmatprep.subr.mxu0 0.0
        %785 = vmatpush2.msra.mxu0 0.0
        %786 = vmatprep.subr.mxu0 0.0
        %787 = vmatpush2.msra.mxu0 0.0
        %788 = vmatprep.subr.mxu0 0.0
        %789 = vmatpush2.msra.mxu0 0.0
        %790 = vmatprep.mubr.f32.mxu0 0.0
        %791 = vmatmul.mubr.f32.gmra.mxu0 %v641
        %v792 = vpop.f32.mrf.mxu0
        %v793 = vadd.f32 %v636, %v792
        %v794 = vpop.f32.mrf.mxu0
        %v795 = vadd.f32 %v638, %v794
        %796 = vdwg.mxu0
        %v797 = vld [vmem:[%s4] sm:$0xf]
        %799 = vset.pattern.permute.xlu0 0
        %800 = vperm.xlu0 %799, %v797
        %v801 = vpop.permute.xlu0 %800
        %v803 = vadd.f32 %v722, %v801
        %v804 = vadd.f32 %v724, %v801
        %v805 = vadd.f32 %v793, %v801
        %v806 = vadd.f32 %v795, %v801
        %v811 = vcombine.low %v803, %v804
        %v812 = vcombine.low %v805, %v806
        %815 = vst [vmem:[%s429] sm:$0xff] %v811
        %816 = vst [vmem:[%s429 + $0x8] sm:$0xff] %v812
        %v817 = vsel %vm485, %v803, 0.0
        %v818 = vsel %vm485, %v804, 0.0
        %v819 = vadd.f32 %v817, %v818
        %v820 = vsel %vm485, %v805, 0.0
        %v821 = vadd.f32 %v819, %v820
        %v822 = vsel %vm485, %v806, 0.0
        %v823 = vadd.f32 %v821, %v822
        %824 = vadd.xlane.f32.xlu0 %v823
        %v825 = vpop.xlane.xlu0 %824
        %vm826 = vcmask 3072
        %827 = vst.msk [vmem:[%s434] sm:$0xf] %vm826, %v825
        %v828 = vmul.f32 %v803, %v803
        %v829 = vmul.f32 %v804, %v804
        %v830 = vmul.f32 %v805, %v805
        %v831 = vmul.f32 %v806, %v806
        %v832 = vsel %vm485, %v828, 0.0
        %v833 = vsel %vm485, %v829, 0.0
        %v834 = vadd.f32 %v832, %v833
        %v835 = vsel %vm485, %v830, 0.0
        %v836 = vadd.f32 %v834, %v835
        %v837 = vsel %vm485, %v831, 0.0
        %v838 = vadd.f32 %v836, %v837
        %839 = vadd.xlane.f32.xlu0 %v838
        %v840 = vpop.xlane.xlu0 %839
        %841 = vst.msk [vmem:[%s438] sm:$0xf] %vm826, %v840
        %s842 = smul.u32 4, %s19
        %p843 = scmp.lt.s32.totalorder %s842, 15
        %s844 = scalar_select %p843, %s842, 15
        %s845 = smul.addr %s844, 4
        %s846 = scalar_lea.vmem %s5, %s845
        %p847 = scmp.lt.s32.totalorder %s19, 3
        %s848 = scalar_select %p847, %s19, 3
        %s849 = smul.addr %s848, 4
        %s850 = scalar_lea.vmem %s6, %s849
        %p851 = scmp.lt.s32.totalorder %s19, 3
        %s852 = scalar_select %p851, %s19, 3
        %s853 = smul.addr %s852, 4
        %s854 = scalar_lea.vmem %s7, %s853
        // Predicated region
        $region87: #{decoder_forward.6} parent=77 // pred_check
          %p855 = pneg %p152
        $region88: #{decoder_forward.6} parent=77 // pred_check_branch
          %857 = sbr.rel (%p855) target = $region90
        $region89: #{decoder_forward.6} parent=77 // pred_region
          %s858 = smul.u32 4, %s19
        $region90: #{decoder_forward.6} parent=77 // pred_fallthru
          _
        // Predicated region
        $region91: #{decoder_forward.6} parent=77 // pred_check
          %p859 = pneg %p178
        $region92: #{decoder_forward.6} parent=77 // pred_check_branch
          %861 = sbr.rel (%p859) target = $region94
        $region93: #{decoder_forward.6} parent=77 // pred_region
          _
        $region94: #{decoder_forward.6} parent=77 // pred_fallthru
          _
        // Predicated region
        $region95: #{decoder_forward.6} parent=77 // pred_check
          %p862 = pneg %p204
        $region96: #{decoder_forward.6} parent=77 // pred_check_branch
          %864 = sbr.rel (%p862) target = $region98
        $region97: #{decoder_forward.6} parent=77 // pred_region
          _
        $region98: #{decoder_forward.6} parent=77 // pred_fallthru
          _
      $region78: #{decoder_forward.6} parent=5 // pred_fallthru
        _
      %p865 = scmp.le.s32.totalorder 2, %s14
      // Predicated region
      $region99: #{decoder_forward.6} parent=5 // pred_check
        %p866 = pneg %p865
      $region100: #{decoder_forward.6} parent=5 // pred_check_branch
        %868 = sbr.rel (%p866) target = $region102
      $region101: #{decoder_forward.6} parent=5 // pred_region
        %s869 = ssub.s32 %s14, 2
        // Predicated region
        $region103: #{decoder_forward.6} parent=101 // pred_check
          %p870 = pneg %p158
        $region104: #{decoder_forward.6} parent=101 // pred_check_branch
          %872 = sbr.rel (%p870) target = $region106
        $region105: #{decoder_forward.6} parent=101 // pred_region
          %s873 = smul.u32 4, %s20
          %p874 = scmp.lt.s32.totalorder %s873, 15
          %s875 = scalar_select %p874, %s873, 15
          %s876 = smul.addr %s875, 4
          %s877 = scalar_lea.vmem %s5, %s876
        $region106: #{decoder_forward.6} parent=101 // pred_fallthru
          _
        // Predicated region
        $region107: #{decoder_forward.6} parent=101 // pred_check
          %p878 = pneg %p184
        $region108: #{decoder_forward.6} parent=101 // pred_check_branch
          %880 = sbr.rel (%p878) target = $region110
        $region109: #{decoder_forward.6} parent=101 // pred_region
          %p881 = scmp.lt.s32.totalorder %s20, 3
          %s882 = scalar_select %p881, %s20, 3
          %s883 = smul.addr %s882, 4
          %s884 = scalar_lea.vmem %s6, %s883
        $region110: #{decoder_forward.6} parent=101 // pred_fallthru
          _
        // Predicated region
        $region111: #{decoder_forward.6} parent=101 // pred_check
          %p885 = pneg %p210
        $region112: #{decoder_forward.6} parent=101 // pred_check_branch
          %887 = sbr.rel (%p885) target = $region114
        $region113: #{decoder_forward.6} parent=101 // pred_region
          %p888 = scmp.lt.s32.totalorder %s20, 3
          %s889 = scalar_select %p888, %s20, 3
          %s890 = smul.addr %s889, 4
          %s891 = scalar_lea.vmem %s7, %s890
        $region114: #{decoder_forward.6} parent=101 // pred_fallthru
          _
      $region102: #{decoder_forward.6} parent=5 // pred_fallthru
        _
    $region6: #{decoder_forward.6} parent=1 // loop_footer
      %s18 = sadd.s32 1, %s14
    $region7: #{decoder_forward.6} parent=1 // loop_footer_branch
      %13 = sbr.rel target = $region3
    $region8: #{decoder_forward.6} parent=1 // loop_exit
      _

// kernel: decoder_forward.8
$region0: #{decoder_forward.8}
  #allocation0 [shape = 'u32[]', space=smem, size = 0x4, offset = 0x4, fixed_abs, tag = 'smem constant byte address 0x4 - core index']
  #allocation1 [shape = 'u32[144,128]{1,0:T(1,128)}', space=vmem, size = 0x12000, scoped, tag = 'internal scratch']
  %s0 = inlined_call_operand.vmem [shape: f32[36,2048], index: 0, kind: input, shape index: {}]
  %s1 = inlined_call_operand.vmem [shape: f32[4,36], index: 1, kind: input, shape index: {}]
  %s2 = inlined_call_operand.vmem [shape: f32[4,1], index: 2, kind: input, shape index: {}]
  %s3 = inlined_call_operand.vmem [shape: f32[4,2048], index: 3, kind: output, shape index: {0}]
  %s4 = inlined_call_operand.vmem [shape: f32[4,4,1], index: 4, kind: output, shape index: {1}]
  %s5 = inlined_call_operand.vmem [shape: f32[4,4,1], index: 5, kind: output, shape index: {2}]
  %6 = xla_tuple %s3, %s4, %s5
  %s7 = sld [smem:[#allocation0]]
  $region84: #{decoder_forward.8} parent=0
    _
  %s9 = ssub.s32 1, %s7
  %s10 = scalar_select 0, %s9, %s7
  $region1: #{decoder_forward.8} parent=0
    #allocation2 [shape = 'u8[163840]{0}', space=vmem, size = 0x28000, scoped, tag = 'input window, operand 0']
    loop: start=0, step=1, limit=6
    $region2: #{decoder_forward.8} parent=1 // loop_pre_header
      _
    $region3: #{decoder_forward.8} parent=1 // loop_header
      %s12 = sphi 0, %s16
      %p13 = scmp.ge.s32.totalorder %s12, 6
      %s22 = sphi 0, %s24
      %s25 = sphi 0, %s22
      %s26 = sphi 0, %s25
      %s42 = sphi 0, %s26
      %s46 = sphi 0, %s46
      %s48 = sphi 0, %s46
      %s49 = sphi 0, %s48
      %s63 = sphi 0, %s49
      %s67 = sphi 0, %s67
      %s69 = sphi 0, %s67
      %s70 = sphi 0, %s69
      %s84 = sphi 0, %s70
      %s90 = sphi 0, %s92
      %s93 = sphi 0, %s90
      %s94 = sphi 0, %s93
      %s110 = sphi 0, %s94
      %s116 = sphi 0, %s118
      %s119 = sphi 0, %s116
      %s120 = sphi 0, %s119
      %s136 = sphi 0, %s120
      %s142 = sphi 0, %s144
      %s145 = sphi 0, %s142
      %s146 = sphi 0, %s145
      %s162 = sphi 0, %s146
    $region4: #{decoder_forward.8} parent=1 // loop_header_branch
      %15 = sbr.rel (%p13) target = $region8
    $region5: #{decoder_forward.8} parent=1 // loop_body
      %s17 = ssub.s32 %s12, 1
      %s18 = ssub.s32 %s12, 2
      %s19 = sadd.s32 %s12, 1
      %s20 = ssub.s32 %s12, %s19
      %p21 = scmp.eq.s32.totalorder %s20, 0
      %s23 = sadd.s32 %s22, 1
      %s24 = scalar_select %p21, %s22, %s23
      %p27 = pneg %p21
      %p28 = scmp.eq.s32.totalorder %s12, 3
      %p29 = por %p27, %p28
      %p30 = scmp.ne.s32.totalorder %s22, %s25
      %p31 = scmp.eq.s32.totalorder %s12, 0
      %p32 = por %p30, %p31
      %p33 = scmp.ne.s32.totalorder %s22, %s25
      %p34 = scmp.eq.s32.totalorder %s17, 3
      %p35 = por %p33, %p34
      %p36 = scmp.ne.s32.totalorder %s25, %s26
      %p37 = scmp.eq.s32.totalorder %s17, 0
      %p38 = por %p36, %p37
      %p39 = scmp.ne.s32.totalorder %s25, %s26
      %p40 = scmp.eq.s32.totalorder %s18, 3
      %p41 = por %p39, %p40
      %p43 = scmp.ne.s32.totalorder %s26, %s42
      %p44 = scmp.eq.s32.totalorder %s18, 0
      %p45 = por %p43, %p44
      %s47 = sadd.s32 %s46, 1
      %p50 = scmp.eq.s32.totalorder %s12, 3
      %p51 = scmp.ne.s32.totalorder %s46, %s48
      %p52 = scmp.eq.s32.totalorder %s12, 0
      %p53 = por %p51, %p52
      %p54 = scmp.ne.s32.totalorder %s46, %s48
      %p55 = scmp.eq.s32.totalorder %s17, 3
      %p56 = por %p54, %p55
      %p57 = scmp.ne.s32.totalorder %s48, %s49
      %p58 = scmp.eq.s32.totalorder %s17, 0
      %p59 = por %p57, %p58
      %p60 = scmp.ne.s32.totalorder %s48, %s49
      %p61 = scmp.eq.s32.totalorder %s18, 3
      %p62 = por %p60, %p61
      %p64 = scmp.ne.s32.totalorder %s49, %s63
      %p65 = scmp.eq.s32.totalorder %s18, 0
      %p66 = por %p64, %p65
      %s68 = sadd.s32 %s67, 1
      %p71 = scmp.eq.s32.totalorder %s12, 3
      %p72 = scmp.ne.s32.totalorder %s67, %s69
      %p73 = scmp.eq.s32.totalorder %s12, 0
      %p74 = por %p72, %p73
      %p75 = scmp.ne.s32.totalorder %s67, %s69
      %p76 = scmp.eq.s32.totalorder %s17, 3
      %p77 = por %p75, %p76
      %p78 = scmp.ne.s32.totalorder %s69, %s70
      %p79 = scmp.eq.s32.totalorder %s17, 0
      %p80 = por %p78, %p79
      %p81 = scmp.ne.s32.totalorder %s69, %s70
      %p82 = scmp.eq.s32.totalorder %s18, 3
      %p83 = por %p81, %p82
      %p85 = scmp.ne.s32.totalorder %s70, %s84
      %p86 = scmp.eq.s32.totalorder %s18, 0
      %p87 = por %p85, %p86
      %s88 = ssub.s32 %s12, %s19
      %p89 = scmp.eq.s32.totalorder %s88, 0
      %s91 = sadd.s32 %s90, 1
      %s92 = scalar_select %p89, %s90, %s91
      %p95 = pneg %p89
      %p96 = scmp.eq.s32.totalorder %s12, 3
      %p97 = por %p95, %p96
      %p98 = scmp.ne.s32.totalorder %s90, %s93
      %p99 = scmp.eq.s32.totalorder %s12, 0
      %p100 = por %p98, %p99
      %p101 = scmp.ne.s32.totalorder %s90, %s93
      %p102 = scmp.eq.s32.totalorder %s17, 3
      %p103 = por %p101, %p102
      %p104 = scmp.ne.s32.totalorder %s93, %s94
      %p105 = scmp.eq.s32.totalorder %s17, 0
      %p106 = por %p104, %p105
      %p107 = scmp.ne.s32.totalorder %s93, %s94
      %p108 = scmp.eq.s32.totalorder %s18, 3
      %p109 = por %p107, %p108
      %p111 = scmp.ne.s32.totalorder %s94, %s110
      %p112 = scmp.eq.s32.totalorder %s18, 0
      %p113 = por %p111, %p112
      %s114 = ssub.s32 %s12, %s19
      %p115 = scmp.eq.s32.totalorder %s114, 0
      %s117 = sadd.s32 %s116, 1
      %s118 = scalar_select %p115, %s116, %s117
      %p121 = pneg %p115
      %p122 = scmp.eq.s32.totalorder %s12, 3
      %p123 = por %p121, %p122
      %p124 = scmp.ne.s32.totalorder %s116, %s119
      %p125 = scmp.eq.s32.totalorder %s12, 0
      %p126 = por %p124, %p125
      %p127 = scmp.ne.s32.totalorder %s116, %s119
      %p128 = scmp.eq.s32.totalorder %s17, 3
      %p129 = por %p127, %p128
      %p130 = scmp.ne.s32.totalorder %s119, %s120
      %p131 = scmp.eq.s32.totalorder %s17, 0
      %p132 = por %p130, %p131
      %p133 = scmp.ne.s32.totalorder %s119, %s120
      %p134 = scmp.eq.s32.totalorder %s18, 3
      %p135 = por %p133, %p134
      %p137 = scmp.ne.s32.totalorder %s120, %s136
      %p138 = scmp.eq.s32.totalorder %s18, 0
      %p139 = por %p137, %p138
      %s140 = ssub.s32 %s12, %s19
      %p141 = scmp.eq.s32.totalorder %s140, 0
      %s143 = sadd.s32 %s142, 1
      %s144 = scalar_select %p141, %s142, %s143
      %p147 = pneg %p141
      %p148 = scmp.eq.s32.totalorder %s12, 3
      %p149 = por %p147, %p148
      %p150 = scmp.ne.s32.totalorder %s142, %s145
      %p151 = scmp.eq.s32.totalorder %s12, 0
      %p152 = por %p150, %p151
      %p153 = scmp.ne.s32.totalorder %s142, %s145
      %p154 = scmp.eq.s32.totalorder %s17, 3
      %p155 = por %p153, %p154
      %p156 = scmp.ne.s32.totalorder %s145, %s146
      %p157 = scmp.eq.s32.totalorder %s17, 0
      %p158 = por %p156, %p157
      %p159 = scmp.ne.s32.totalorder %s145, %s146
      %p160 = scmp.eq.s32.totalorder %s18, 3
      %p161 = por %p159, %p160
      %p163 = scmp.ne.s32.totalorder %s146, %s162
      %p164 = scmp.eq.s32.totalorder %s18, 0
      %p165 = por %p163, %p164
      %p166 = scmp.le.s32.totalorder 1, %s12
      %p167 = scmp.lt.s32.totalorder %s12, 5
      %p168 = pnand %p166, %p167
      %p169 = pneg %p168
      // Predicated region
      $region9: #{decoder_forward.8} parent=5 // pred_check
        _
      $region10: #{decoder_forward.8} parent=5 // pred_check_branch
        %171 = sbr.rel (%p168) target = $region12
      $region11: #{decoder_forward.8} parent=5 // pred_region
        %s172 = ssub.s32 %s12, 1
        // Predicated region
        $region13: #{decoder_forward.8} parent=11 // pred_check
          %p173 = pneg %p59
        $region14: #{decoder_forward.8} parent=11 // pred_check_branch
          %175 = sbr.rel (%p173) target = $region16
        $region15: #{decoder_forward.8} parent=11 // pred_region
          _
        $region16: #{decoder_forward.8} parent=11 // pred_fallthru
          _
        // Predicated region
        $region17: #{decoder_forward.8} parent=11 // pred_check
          %p176 = pneg %p80
        $region18: #{decoder_forward.8} parent=11 // pred_check_branch
          %178 = sbr.rel (%p176) target = $region20
        $region19: #{decoder_forward.8} parent=11 // pred_region
          _
        $region20: #{decoder_forward.8} parent=11 // pred_fallthru
          _
      $region12: #{decoder_forward.8} parent=5 // pred_fallthru
        _
      %p179 = scmp.lt.s32.totalorder %s12, 4
      // Predicated region
      $region21: #{decoder_forward.8} parent=5 // pred_check
        %p180 = pneg %p179
      $region22: #{decoder_forward.8} parent=5 // pred_check_branch
        %182 = sbr.rel (%p180) target = $region24
      $region23: #{decoder_forward.8} parent=5 // pred_region
        // Predicated region
        $region25: #{decoder_forward.8} parent=23 // pred_check
          %p183 = pneg %p32
        $region26: #{decoder_forward.8} parent=23 // pred_check_branch
          %185 = sbr.rel (%p183) target = $region28
        $region27: #{decoder_forward.8} parent=23 // pred_region
          %s186 = sand.u32 %s22, 1
          %s187 = sand.u32 %s22, 1
          %s188 = smul.addr %s187, 160
          %s189 = scalar_lea.vmem [#allocation2], %s188
          %s190 = smul.u32 4, %s12
          %s191 = smul.addr %s190, 8
          %s192 = scalar_lea.vmem %s0, %s191
          // Predicated region
          $region29: #{decoder_forward.8} parent=27 // pred_check
            _
          $region30: #{decoder_forward.8} parent=27 // pred_check_branch
            %194 = sbr.rel (0) target = $region32
          $region31: #{decoder_forward.8} parent=27 // pred_region
            // Predicated region
            $region33: #{decoder_forward.8} parent=31 // pred_check
              _
            $region34: #{decoder_forward.8} parent=31 // pred_check_branch
              %196 = sbr.rel (0) target = $region36
            $region35: #{decoder_forward.8} parent=31 // pred_region
              loop: start=0, step=1, limit=1
              $region37: #{decoder_forward.8} parent=35 // loop_pre_header
                _
              $region38: #{decoder_forward.8} parent=35 // loop_header
                %s198 = sphi 0, %s202
                %p199 = scmp.ge.s32.totalorder %s198, 1
                %s203 = sphi %s192, %s192
                %s204 = sphi %s189, %s189
              $region39: #{decoder_forward.8} parent=35 // loop_header_branch
                %201 = sbr.rel (%p199) target = $region43
              $region40: #{decoder_forward.8} parent=35 // loop_body
                %v205 = vld [vmem:[%s203] sm:$0xff]
                %206 = vst [vmem:[%s204] sm:$0xff] %v205
                %v207 = vld [vmem:[%s203 + $0x8] sm:$0xff]
                %208 = vst [vmem:[%s204 + $0x8] sm:$0xff] %v207
                %v209 = vld [vmem:[%s203 + $0x10] sm:$0xff]
                %210 = vst [vmem:[%s204 + $0x10] sm:$0xff] %v209
                %v211 = vld [vmem:[%s203 + $0x18] sm:$0xff]
                %212 = vst [vmem:[%s204 + $0x18] sm:$0xff] %v211
                %v213 = vld [vmem:[%s203 + $0x80] sm:$0xff]
                %214 = vst [vmem:[%s204 + $0x20] sm:$0xff] %v213
                %v215 = vld [vmem:[%s203 + $0x88] sm:$0xff]
                %216 = vst [vmem:[%s204 + $0x28] sm:$0xff] %v215
                %v217 = vld [vmem:[%s203 + $0x90] sm:$0xff]
                %218 = vst [vmem:[%s204 + $0x30] sm:$0xff] %v217
                %v219 = vld [vmem:[%s203 + $0x98] sm:$0xff]
                %220 = vst [vmem:[%s204 + $0x38] sm:$0xff] %v219
                %v221 = vld [vmem:[%s203 + $0x100] sm:$0xff]
                %222 = vst [vmem:[%s204 + $0x40] sm:$0xff] %v221
                %v223 = vld [vmem:[%s203 + $0x108] sm:$0xff]
                %224 = vst [vmem:[%s204 + $0x48] sm:$0xff] %v223
                %v225 = vld [vmem:[%s203 + $0x110] sm:$0xff]
                %226 = vst [vmem:[%s204 + $0x50] sm:$0xff] %v225
                %v227 = vld [vmem:[%s203 + $0x118] sm:$0xff]
                %228 = vst [vmem:[%s204 + $0x58] sm:$0xff] %v227
                %v229 = vld [vmem:[%s203 + $0x180] sm:$0xff]
                %230 = vst [vmem:[%s204 + $0x60] sm:$0xff] %v229
                %v231 = vld [vmem:[%s203 + $0x188] sm:$0xff]
                %232 = vst [vmem:[%s204 + $0x68] sm:$0xff] %v231
                %v233 = vld [vmem:[%s203 + $0x190] sm:$0xff]
                %234 = vst [vmem:[%s204 + $0x70] sm:$0xff] %v233
                %v235 = vld [vmem:[%s203 + $0x198] sm:$0xff]
                %236 = vst [vmem:[%s204 + $0x78] sm:$0xff] %v235
                %v237 = vld [vmem:[%s203 + $0x200] sm:$0xff]
                %238 = vst [vmem:[%s204 + $0x80] sm:$0xff] %v237
                %v239 = vld [vmem:[%s203 + $0x208] sm:$0xff]
                %240 = vst [vmem:[%s204 + $0x88] sm:$0xff] %v239
                %v241 = vld [vmem:[%s203 + $0x210] sm:$0xff]
                %242 = vst [vmem:[%s204 + $0x90] sm:$0xff] %v241
                %v243 = vld [vmem:[%s203 + $0x218] sm:$0xff]
                %244 = vst [vmem:[%s204 + $0x98] sm:$0xff] %v243
              $region41: #{decoder_forward.8} parent=35 // loop_footer
                %s202 = sadd.s32 1, %s198
              $region42: #{decoder_forward.8} parent=35 // loop_footer_branch
                %197 = sbr.rel target = $region38
              $region43: #{decoder_forward.8} parent=35 // loop_exit
                _
            $region36: #{decoder_forward.8} parent=31 // pred_fallthru
              _
            // Predicated region
            $region44: #{decoder_forward.8} parent=31 // pred_check
              _
            $region45: #{decoder_forward.8} parent=31 // pred_check_branch
              %246 = sbr.rel target = $region47
            $region46: #{decoder_forward.8} parent=31 // pred_region
              _
            $region47: #{decoder_forward.8} parent=31 // pred_fallthru
              _
          $region32: #{decoder_forward.8} parent=27 // pred_fallthru
            _
          %247 = vnop
        $region28: #{decoder_forward.8} parent=23 // pred_fallthru
          _
      $region24: #{decoder_forward.8} parent=5 // pred_fallthru
        _
      %p248 = scmp.le.s32.totalorder 1, %s12
      %p249 = scmp.lt.s32.totalorder %s12, 5
      %p250 = pnand %p248, %p249
      %p251 = pneg %p250
      // Predicated region
      $region48: #{decoder_forward.8} parent=5 // pred_check
        _
      $region49: #{decoder_forward.8} parent=5 // pred_check_branch
        %253 = sbr.rel (%p250) target = $region51
      $region50: #{decoder_forward.8} parent=5 // pred_region
        %s254 = ssub.s32 %s12, 1
        %s255 = sand.u32 %s25, 1
        %s256 = sand.u32 %s25, 1
        %s257 = smul.addr %s256, 160
        %s258 = scalar_lea.vmem [#allocation2], %s257
        // Predicated region
        $region52: #{decoder_forward.8} parent=50 // pred_check
          %p259 = pneg %p38
        $region53: #{decoder_forward.8} parent=50 // pred_check_branch
          %261 = sbr.rel (%p259) target = $region55
        $region54: #{decoder_forward.8} parent=50 // pred_region
          _
        $region55: #{decoder_forward.8} parent=50 // pred_fallthru
          _
        %s262 = sand.u32 %s25, 1
        %s263 = sand.u32 %s25, 1
        %s264 = smul.addr %s263, 160
        %s265 = scalar_lea.vmem [#allocation2], %s264
        %p266 = pneg %p38
        %p267 = pneg %p35
        %p268 = pneg %p59
        %p269 = pneg %p56
        %p270 = pneg %p80
        %p271 = pneg %p77
        %p272 = pneg %p106
        %p273 = pneg %p103
        %s274 = smul.u32 4, %s17
        %p275 = scmp.lt.s32.totalorder %s274, 15
        %s276 = scalar_select %p275, %s274, 15
        %s277 = smul.addr %s276, 4
        %s278 = scalar_lea.vmem %s3, %s277
        %p279 = pneg %p132
        %p280 = pneg %p129
        %p281 = scmp.lt.s32.totalorder %s17, 3
        %s282 = scalar_select %p281, %s17, 3
        %s283 = smul.addr %s282, 4
        %s284 = scalar_lea.vmem %s4, %s283
        %p285 = pneg %p158
        %p286 = pneg %p155
        %p287 = scmp.lt.s32.totalorder %s17, 3
        %s288 = scalar_select %p287, %s17, 3
        %s289 = smul.addr %s288, 4
        %s290 = scalar_lea.vmem %s5, %s289
        %s291 = smul.u32 4, %s17
        %s292 = smul.u32 4, %s17
        %p293 = scmp.lt.s32.totalorder %s292, 15
        %s294 = scalar_select %p293, %s292, 15
        %s295 = smul.addr %s294, 4
        %s296 = scalar_lea.vmem %s3, %s295
        %s297 = smul.u32 4, %s17
        %p298 = scmp.lt.s32.totalorder %s17, 3
        %s299 = scalar_select %p298, %s17, 3
        %s300 = smul.addr %s299, 4
        %s301 = scalar_lea.vmem %s4, %s300
        %p302 = scmp.lt.s32.totalorder %s17, 3
        %s303 = scalar_select %p302, %s17, 3
        %s304 = smul.addr %s303, 4
        %s305 = scalar_lea.vmem %s5, %s304
        %v306 = vld [vmem:[%s1] sm:$0xf]
        %v307 = vld [vmem:[%s258] sm:$0xff]
        %v308 = vld [vmem:[%s258 + $0x8] sm:$0xff]
        %v309 = vld [vmem:[%s258 + $0x10] sm:$0xff]
        %v310 = vld [vmem:[%s258 + $0x18] sm:$0xff]
        %v311 = vld [vmem:[%s258 + $0x20] sm:$0xff]
        %v312 = vld [vmem:[%s258 + $0x28] sm:$0xff]
        %v313 = vld [vmem:[%s258 + $0x30] sm:$0xff]
        %v314 = vld [vmem:[%s258 + $0x38] sm:$0xff]
        %v315 = vld [vmem:[%s258 + $0x40] sm:$0xff]
        %v316 = vld [vmem:[%s258 + $0x48] sm:$0xff]
        %v317 = vld [vmem:[%s258 + $0x50] sm:$0xff]
        %v318 = vld [vmem:[%s258 + $0x58] sm:$0xff]
        %v319 = vld [vmem:[%s258 + $0x60] sm:$0xff]
        %v320 = vld [vmem:[%s258 + $0x68] sm:$0xff]
        %v321 = vld [vmem:[%s258 + $0x70] sm:$0xff]
        %v322 = vld [vmem:[%s258 + $0x78] sm:$0xff]
        %v323 = vld [vmem:[%s258 + $0x80] sm:$0xf]
        %v324 = vld [vmem:[%s258 + $0x88] sm:$0xf]
        %v325 = vld [vmem:[%s258 + $0x90] sm:$0xf]
        %v326 = vld [vmem:[%s258 + $0x98] sm:$0xf]
        %v327 = vld [vmem:[%s2] sm:$0xf]
        %329 = vset.pattern.permute.xlu0 0
        %330 = vperm.xlu0 %329, %v327
        %v331 = vpop.permute.xlu0 %330
        %vm333 = vcmask 293888
        %v335 = vsel %vm333, %v306, 0
        %vm337 = vcmask 1043456
        %v339 = vsel %vm337, %v323, 0
        %v342 = vsel %vm337, %v324, 0
        %v345 = vsel %vm337, %v325, 0
        %v348 = vsel %vm337, %v326, 0
        %350 = vmatprep.subr.mxu0 0.0
        %351 = vmatpush1.msra.mxu0 0.0
        %352 = vmatprep.subr.mxu0 0.0
        %353 = vmatpush1.msra.mxu0 0.0
        %354 = vmatprep.subr.mxu0 0.0
        %355 = vmatpush1.msra.mxu0 0.0
        %356 = vmatprep.subr.mxu0 0.0
        %357 = vmatpush1.msra.mxu0 0.0
        %358 = vmatprep.subr.mxu0 0.0
        %359 = vmatpush1.msra.mxu0 0.0
        %360 = vmatprep.subr.mxu0 0.0
        %361 = vmatpush1.msra.mxu0 0.0
        %362 = vmatprep.subr.mxu0 0.0
        %363 = vmatpush1.msra.mxu0 0.0
        %364 = vmatprep.subr.mxu0 0.0
        %365 = vmatpush1.msra.mxu0 0.0
        %366 = vmatprep.subr.mxu0 0.0
        %367 = vmatpush1.msra.mxu0 0.0
        %368 = vmatprep.subr.mxu0 0.0
        %369 = vmatpush1.msra.mxu0 0.0
        %370 = vmatprep.subr.mxu0 0.0
        %371 = vmatpush1.msra.mxu0 0.0
        %372 = vmatprep.subr.mxu0 %v342
        %373 = vmatpush1.msra.mxu0 %v339
        %374 = vmatprep.subr.mxu0 %v320
        %375 = vmatpush1.msra.mxu0 %v319
        %376 = vmatprep.subr.mxu0 %v316
        %377 = vmatpush1.msra.mxu0 %v315
        %378 = vmatprep.subr.mxu0 %v312
        %379 = vmatpush1.msra.mxu0 %v311
        %380 = vmatprep.subr.mxu0 %v308
        %381 = vmatpush1.msra.mxu0 %v307
        %382 = vmatprep.subr.mxu0 0.0
        %383 = vmatpush2.msra.mxu0 0.0
        %384 = vmatprep.subr.mxu0 0.0
        %385 = vmatpush2.msra.mxu0 0.0
        %386 = vmatprep.subr.mxu0 0.0
        %387 = vmatpush2.msra.mxu0 0.0
        %388 = vmatprep.subr.mxu0 0.0
        %389 = vmatpush2.msra.mxu0 0.0
        %390 = vmatprep.subr.mxu0 0.0
        %391 = vmatpush2.msra.mxu0 0.0
        %392 = vmatprep.subr.mxu0 0.0
        %393 = vmatpush2.msra.mxu0 0.0
        %394 = vmatprep.subr.mxu0 0.0
        %395 = vmatpush2.msra.mxu0 0.0
        %396 = vmatprep.subr.mxu0 0.0
        %397 = vmatpush2.msra.mxu0 0.0
        %398 = vmatprep.subr.mxu0 0.0
        %399 = vmatpush2.msra.mxu0 0.0
        %400 = vmatprep.subr.mxu0 0.0
        %401 = vmatpush2.msra.mxu0 0.0
        %402 = vmatprep.subr.mxu0 0.0
        %403 = vmatpush2.msra.mxu0 0.0
        %404 = vmatprep.subr.mxu0 0.0
        %405 = vmatpush2.msra.mxu0 0.0
        %406 = vmatprep.subr.mxu0 0.0
        %407 = vmatpush2.msra.mxu0 0.0
        %408 = vmatprep.subr.mxu0 0.0
        %409 = vmatpush2.msra.mxu0 0.0
        %410 = vmatprep.subr.mxu0 0.0
        %411 = vmatpush2.msra.mxu0 0.0
        %412 = vmatprep.subr.mxu0 0.0
        %413 = vmatpush2.msra.mxu0 0.0
        %414 = vmatprep.mubr.f32.mxu0 0.0
        %415 = vmatmul.mubr.f32.gmra.mxu0 %v335
        %v416 = vpop.f32.mrf.mxu0
        %v417 = vadd.f32 %v331, %v416
        %v418 = vpop.f32.mrf.mxu0
        %v419 = vadd.f32 %v331, %v418
        %420 = vdwg.mxu0
        %421 = vmatprep.subr.mxu0 0.0
        %422 = vmatpush1.msra.mxu0 0.0
        %423 = vmatprep.subr.mxu0 0.0
        %424 = vmatpush1.msra.mxu0 0.0
        %425 = vmatprep.subr.mxu0 0.0
        %426 = vmatpush1.msra.mxu0 0.0
        %427 = vmatprep.subr.mxu0 0.0
        %428 = vmatpush1.msra.mxu0 0.0
        %429 = vmatprep.subr.mxu0 0.0
        %430 = vmatpush1.msra.mxu0 0.0
        %431 = vmatprep.subr.mxu0 0.0
        %432 = vmatpush1.msra.mxu0 0.0
        %433 = vmatprep.subr.mxu0 0.0
        %434 = vmatpush1.msra.mxu0 0.0
        %435 = vmatprep.subr.mxu0 0.0
        %436 = vmatpush1.msra.mxu0 0.0
        %437 = vmatprep.subr.mxu0 0.0
        %438 = vmatpush1.msra.mxu0 0.0
        %439 = vmatprep.subr.mxu0 0.0
        %440 = vmatpush1.msra.mxu0 0.0
        %441 = vmatprep.subr.mxu0 0.0
        %442 = vmatpush1.msra.mxu0 0.0
        %443 = vmatprep.subr.mxu0 %v348
        %444 = vmatpush1.msra.mxu0 %v345
        %445 = vmatprep.subr.mxu0 %v322
        %446 = vmatpush1.msra.mxu0 %v321
        %447 = vmatprep.subr.mxu0 %v318
        %448 = vmatpush1.msra.mxu0 %v317
        %449 = vmatprep.subr.mxu0 %v314
        %450 = vmatpush1.msra.mxu0 %v313
        %451 = vmatprep.subr.mxu0 %v310
        %452 = vmatpush1.msra.mxu0 %v309
        %453 = vmatprep.subr.mxu0 0.0
        %454 = vmatpush2.msra.mxu0 0.0
        %455 = vmatprep.subr.mxu0 0.0
        %456 = vmatpush2.msra.mxu0 0.0
        %457 = vmatprep.subr.mxu0 0.0
        %458 = vmatpush2.msra.mxu0 0.0
        %459 = vmatprep.subr.mxu0 0.0
        %460 = vmatpush2.msra.mxu0 0.0
        %461 = vmatprep.subr.mxu0 0.0
        %462 = vmatpush2.msra.mxu0 0.0
        %463 = vmatprep.subr.mxu0 0.0
        %464 = vmatpush2.msra.mxu0 0.0
        %465 = vmatprep.subr.mxu0 0.0
        %466 = vmatpush2.msra.mxu0 0.0
        %467 = vmatprep.subr.mxu0 0.0
        %468 = vmatpush2.msra.mxu0 0.0
        %469 = vmatprep.subr.mxu0 0.0
        %470 = vmatpush2.msra.mxu0 0.0
        %471 = vmatprep.subr.mxu0 0.0
        %472 = vmatpush2.msra.mxu0 0.0
        %473 = vmatprep.subr.mxu0 0.0
        %474 = vmatpush2.msra.mxu0 0.0
        %475 = vmatprep.subr.mxu0 0.0
        %476 = vmatpush2.msra.mxu0 0.0
        %477 = vmatprep.subr.mxu0 0.0
        %478 = vmatpush2.msra.mxu0 0.0
        %479 = vmatprep.subr.mxu0 0.0
        %480 = vmatpush2.msra.mxu0 0.0
        %481 = vmatprep.subr.mxu0 0.0
        %482 = vmatpush2.msra.mxu0 0.0
        %483 = vmatprep.subr.mxu0 0.0
        %484 = vmatpush2.msra.mxu0 0.0
        %485 = vmatprep.mubr.f32.mxu0 0.0
        %486 = vmatmul.mubr.f32.gmra.mxu0 %v335
        %v487 = vpop.f32.mrf.mxu0
        %v488 = vadd.f32 %v331, %v487
        %v489 = vpop.f32.mrf.mxu0
        %v490 = vadd.f32 %v331, %v489
        %491 = vdwg.mxu0
        %v496 = vcombine.low %v417, %v419
        %v497 = vcombine.low %v488, %v490
        %500 = vst [vmem:[%s296] sm:$0xff] %v496
        %501 = vst [vmem:[%s296 + $0x8] sm:$0xff] %v497
        %v502 = vsel %vm337, %v417, 0.0
        %v503 = vsel %vm337, %v419, 0.0
        %v504 = vadd.f32 %v502, %v503
        %v505 = vsel %vm337, %v488, 0.0
        %v506 = vadd.f32 %v504, %v505
        %v507 = vsel %vm337, %v490, 0.0
        %v508 = vadd.f32 %v506, %v507
        %509 = vadd.xlane.f32.xlu0 %v508
        %v510 = vpop.xlane.xlu0 %509
        %vm511 = vcmask 3072
        %512 = vst.msk [vmem:[%s301] sm:$0xf] %vm511, %v510
        %v513 = vmul.f32 %v417, %v417
        %v514 = vmul.f32 %v419, %v419
        %v515 = vmul.f32 %v488, %v488
        %v516 = vmul.f32 %v490, %v490
        %v517 = vsel %vm337, %v513, 0.0
        %v518 = vsel %vm337, %v514, 0.0
        %v519 = vadd.f32 %v517, %v518
        %v520 = vsel %vm337, %v515, 0.0
        %v521 = vadd.f32 %v519, %v520
        %v522 = vsel %vm337, %v516, 0.0
        %v523 = vadd.f32 %v521, %v522
        %524 = vadd.xlane.f32.xlu0 %v523
        %v525 = vpop.xlane.xlu0 %524
        %526 = vst.msk [vmem:[%s305] sm:$0xf] %vm511, %v525
        %s527 = smul.u32 4, %s17
        %p528 = scmp.lt.s32.totalorder %s527, 15
        %s529 = scalar_select %p528, %s527, 15
        %s530 = smul.addr %s529, 4
        %s531 = scalar_lea.vmem %s3, %s530
        %p532 = scmp.lt.s32.totalorder %s17, 3
        %s533 = scalar_select %p532, %s17, 3
        %s534 = smul.addr %s533, 4
        %s535 = scalar_lea.vmem %s4, %s534
        %p536 = scmp.lt.s32.totalorder %s17, 3
        %s537 = scalar_select %p536, %s17, 3
        %s538 = smul.addr %s537, 4
        %s539 = scalar_lea.vmem %s5, %s538
        // Predicated region
        $region56: #{decoder_forward.8} parent=50 // pred_check
          %p540 = pneg %p103
        $region57: #{decoder_forward.8} parent=50 // pred_check_branch
          %542 = sbr.rel (%p540) target = $region59
        $region58: #{decoder_forward.8} parent=50 // pred_region
          %s543 = smul.u32 4, %s17
        $region59: #{decoder_forward.8} parent=50 // pred_fallthru
          _
        // Predicated region
        $region60: #{decoder_forward.8} parent=50 // pred_check
          %p544 = pneg %p129
        $region61: #{decoder_forward.8} parent=50 // pred_check_branch
          %546 = sbr.rel (%p544) target = $region63
        $region62: #{decoder_forward.8} parent=50 // pred_region
          _
        $region63: #{decoder_forward.8} parent=50 // pred_fallthru
          _
        // Predicated region
        $region64: #{decoder_forward.8} parent=50 // pred_check
          %p547 = pneg %p155
        $region65: #{decoder_forward.8} parent=50 // pred_check_branch
          %549 = sbr.rel (%p547) target = $region67
        $region66: #{decoder_forward.8} parent=50 // pred_region
          _
        $region67: #{decoder_forward.8} parent=50 // pred_fallthru
          _
      $region51: #{decoder_forward.8} parent=5 // pred_fallthru
        _
      %p550 = scmp.le.s32.totalorder 2, %s12
      // Predicated region
      $region68: #{decoder_forward.8} parent=5 // pred_check
        %p551 = pneg %p550
      $region69: #{decoder_forward.8} parent=5 // pred_check_branch
        %553 = sbr.rel (%p551) target = $region71
      $region70: #{decoder_forward.8} parent=5 // pred_region
        %s554 = ssub.s32 %s12, 2
        // Predicated region
        $region72: #{decoder_forward.8} parent=70 // pred_check
          %p555 = pneg %p109
        $region73: #{decoder_forward.8} parent=70 // pred_check_branch
          %557 = sbr.rel (%p555) target = $region75
        $region74: #{decoder_forward.8} parent=70 // pred_region
          %s558 = smul.u32 4, %s18
          %p559 = scmp.lt.s32.totalorder %s558, 15
          %s560 = scalar_select %p559, %s558, 15
          %s561 = smul.addr %s560, 4
          %s562 = scalar_lea.vmem %s3, %s561
        $region75: #{decoder_forward.8} parent=70 // pred_fallthru
          _
        // Predicated region
        $region76: #{decoder_forward.8} parent=70 // pred_check
          %p563 = pneg %p135
        $region77: #{decoder_forward.8} parent=70 // pred_check_branch
          %565 = sbr.rel (%p563) target = $region79
        $region78: #{decoder_forward.8} parent=70 // pred_region
          %p566 = scmp.lt.s32.totalorder %s18, 3
          %s567 = scalar_select %p566, %s18, 3
          %s568 = smul.addr %s567, 4
          %s569 = scalar_lea.vmem %s4, %s568
        $region79: #{decoder_forward.8} parent=70 // pred_fallthru
          _
        // Predicated region
        $region80: #{decoder_forward.8} parent=70 // pred_check
          %p570 = pneg %p161
        $region81: #{decoder_forward.8} parent=70 // pred_check_branch
          %572 = sbr.rel (%p570) target = $region83
        $region82: #{decoder_forward.8} parent=70 // pred_region
          %p573 = scmp.lt.s32.totalorder %s18, 3
          %s574 = scalar_select %p573, %s18, 3
          %s575 = smul.addr %s574, 4
          %s576 = scalar_lea.vmem %s5, %s575
        $region83: #{decoder_forward.8} parent=70 // pred_fallthru
          _
      $region71: #{decoder_forward.8} parent=5 // pred_fallthru
        _
    $region6: #{decoder_forward.8} parent=1 // loop_footer
      %s16 = sadd.s32 1, %s12
    $region7: #{decoder_forward.8} parent=1 // loop_footer_branch
      %11 = sbr.rel target = $region3
    $region8: #{decoder_forward.8} parent=1 // loop_exit
      _

</llo_original>
